<compile_context>
chip_gen: v5e
topology: v5e:2x2
jax: 0.10.0
libtpu: 0.0.40
codegen_flags: <defaults>
</compile_context>

<pallas_src>
import jax
import jax.numpy as jnp
from jax.experimental import pallas as pl
from jax.experimental.pallas import tpu as pltpu

# Keep fp32 matmul numerics tight so the Pallas kernels match the pure-JAX /
# PyTorch reference at small tolerances. (For max throughput on v6e/v7x one would
# cast activations/weights to bfloat16 with fp32 accumulation and loosen the check.)
jax.config.update("jax_default_matmul_precision", "highest")


def _round_up(x, m):
    return ((x + m - 1) // m) * m


# -----------------------------------------------------------------------------
# Kernel 1 (time-parallel): gi = (x @ W_in + b_in) @ W_ih + b_ih
# -----------------------------------------------------------------------------
def input_proj_kernel(x_ref, w_in_ref, b_in_ref, w_ih_ref, b_ih_ref, gi_ref):
    t, b, in_p = x_ref.shape
    x2 = x_ref[...].reshape(t * b, in_p)
    e = jnp.dot(x2, w_in_ref[...], preferred_element_type=jnp.float32) + b_in_ref[...]
    gi = jnp.dot(e, w_ih_ref[...], preferred_element_type=jnp.float32) + b_ih_ref[...]
    gi_ref[...] = gi.reshape(t, b, gi.shape[-1])


# -----------------------------------------------------------------------------
# Kernel 2 (sequential): GRU recurrence over precomputed gate inputs.
# Hidden state persists in VMEM scratch across time-chunk grid steps.
# -----------------------------------------------------------------------------
def gru_recurrent_kernel(gi_ref, w_hh_ref, b_hh_ref, h_out_ref, h_state):
    h_p = h_state.shape[-1]
    t_chunk = gi_ref.shape[0]

    @pl.when(pl.program_id(1) == 0)           # new batch tile -> h0 = 0
    def _():
        h_state[...] = jnp.zeros_like(h_state)

    w_hh = w_hh_ref[...]                      # hoisted out of the time loop
    b_hh = b_hh_ref[...]

    def step(i, h):
        gi_t = gi_ref[i]                      # (B_TILE, 3*H_p); b_ih already folded in
        gh = jnp.dot(h, w_hh, preferred_element_type=jnp.float32) + b_hh
        # PyTorch gate order (r, z, n); gate slices are lane-aligned (H_p % 128 == 0).
        r = jax.nn.sigmoid(gi_t[:, 0 * h_p:1 * h_p] + gh[:, 0 * h_p:1 * h_p])
        z = jax.nn.sigmoid(gi_t[:, 1 * h_p:2 * h_p] + gh[:, 1 * h_p:2 * h_p])
        n = jnp.tanh(gi_t[:, 2 * h_p:3 * h_p] + r * gh[:, 2 * h_p:3 * h_p])
        h_new = (1.0 - z) * n + z * h
        h_out_ref[i] = h_new                  # lane-dense (B_TILE, H_p) store
        return h_new

    h_state[...] = jax.lax.fori_loop(0, t_chunk, step, h_state[...], unroll=True)


# -----------------------------------------------------------------------------
# Kernel 3 (time-parallel): y = h @ W_out + b_out
# -----------------------------------------------------------------------------
def output_proj_kernel(h_ref, w_out_ref, b_out_ref, y_ref):
    t, b, h_p = h_ref.shape
    h2 = h_ref[...].reshape(t * b, h_p)
    y = jnp.dot(h2, w_out_ref[...], preferred_element_type=jnp.float32) + b_out_ref[...]
    y_ref[...] = y.reshape(t, b, y.shape[-1])


def _pad_gate_cols(w, h, h_p):
    """(..., 3h) -> (..., 3*h_p): gate g occupies columns [g*h_p, g*h_p + h)."""
    out = jnp.zeros(w.shape[:-1] + (3 * h_p,), w.dtype)
    for g in range(3):
        out = out.at[..., g * h_p: g * h_p + h].set(w[..., g * h:(g + 1) * h])
    return out


def rnn_w_continuous_input(x, params, *, time_chunk=32):
    """x: (B, L, input_size) float32 -> (B, L, input_size) float32."""
    B, L, IN = x.shape
    E = params["w_in_t"].shape[1]
    H = params["w_hh_t"].shape[0]

    # Padded sizes: sublane (8) for batch, lane (128) for feature dims.
    IN_p = _round_up(IN, 128)
    E_p = _round_up(E, 128)
    H_p = _round_up(H, 128)
    B8 = _round_up(B, 8)
    B_TILE = min(B8, 128)
    B_p = _round_up(B8, B_TILE)
    T_CHUNK = min(L, time_chunk)
    L_p = _round_up(L, T_CHUNK)

    f32 = jnp.float32

    # Zero-pad input (time-major) and weights; padded rows/lanes remain exactly 0.
    x_tm = jnp.transpose(x, (1, 0, 2)).astype(f32)                     # (L, B, IN)
    x_tm = jnp.pad(x_tm, ((0, L_p - L), (0, B_p - B), (0, IN_p - IN)))

    w_in = jnp.pad(params["w_in_t"].astype(f32), ((0, IN_p - IN), (0, E_p - E)))
    b_in = jnp.pad(params["b_in"].astype(f32), ((0, 0), (0, E_p - E)))
    w_ih = _pad_gate_cols(jnp.pad(params["w_ih_t"].astype(f32), ((0, E_p - E), (0, 0))), H, H_p)
    b_ih = _pad_gate_cols(params["b_ih"].astype(f32), H, H_p)
    w_hh = _pad_gate_cols(jnp.pad(params["w_hh_t"].astype(f32), ((0, H_p - H), (0, 0))), H, H_p)
    b_hh = _pad_gate_cols(params["b_hh"].astype(f32), H, H_p)
    w_out = jnp.pad(params["w_out_t"].astype(f32), ((0, H_p - H), (0, IN_p - IN)))
    b_out = jnp.pad(params["b_out"].astype(f32), ((0, 0), (0, IN_p - IN)))

    grid = (B_p // B_TILE, L_p // T_CHUNK)
    par_params = pltpu.CompilerParams(dimension_semantics=("parallel", "parallel"))
    seq_params = pltpu.CompilerParams(dimension_semantics=("parallel", "arbitrary"))

    # 1) Hoisted, time-parallel gate-input GEMMs (b_ih folded into gi).
    gi = pl.pallas_call(
        input_proj_kernel,
        out_shape=jax.ShapeDtypeStruct((L_p, B_p, 3 * H_p), f32),
        grid_spec=pltpu.PrefetchScalarGridSpec(
            num_scalar_prefetch=0,
            grid=grid,
            in_specs=[
                pl.BlockSpec((T_CHUNK, B_TILE, IN_p), lambda b, t: (t, b, 0)),
                pl.BlockSpec((IN_p, E_p), lambda b, t: (0, 0)),
                pl.BlockSpec((1, E_p), lambda b, t: (0, 0)),
                pl.BlockSpec((E_p, 3 * H_p), lambda b, t: (0, 0)),
                pl.BlockSpec((1, 3 * H_p), lambda b, t: (0, 0)),
            ],
            out_specs=pl.BlockSpec((T_CHUNK, B_TILE, 3 * H_p), lambda b, t: (t, b, 0)),
        ),
        compiler_params=par_params,
    )(x_tm, w_in, b_in, w_ih, b_ih)

    # 2) Sequential GRU recurrence: only h @ W_hh + gates remain in the loop.
    h_all = pl.pallas_call(
        gru_recurrent_kernel,
        out_shape=jax.ShapeDtypeStruct((L_p, B_p, H_p), f32),
        grid_spec=pltpu.PrefetchScalarGridSpec(
            num_scalar_prefetch=0,
            grid=grid,
            in_specs=[
                pl.BlockSpec((T_CHUNK, B_TILE, 3 * H_p), lambda b, t: (t, b, 0)),
                pl.BlockSpec((H_p, 3 * H_p), lambda b, t: (0, 0)),
                pl.BlockSpec((1, 3 * H_p), lambda b, t: (0, 0)),
            ],
            out_specs=pl.BlockSpec((T_CHUNK, B_TILE, H_p), lambda b, t: (t, b, 0)),
            scratch_shapes=[pltpu.VMEM((B_TILE, H_p), f32)],   # persistent hidden state
        ),
        compiler_params=seq_params,
    )(gi, w_hh, b_hh)

    # 3) Hoisted, time-parallel output projection.
    y_tm = pl.pallas_call(
        output_proj_kernel,
        out_shape=jax.ShapeDtypeStruct((L_p, B_p, IN_p), f32),
        grid_spec=pltpu.PrefetchScalarGridSpec(
            num_scalar_prefetch=0,
            grid=grid,
            in_specs=[
                pl.BlockSpec((T_CHUNK, B_TILE, H_p), lambda b, t: (t, b, 0)),
                pl.BlockSpec((H_p, IN_p), lambda b, t: (0, 0)),
                pl.BlockSpec((1, IN_p), lambda b, t: (0, 0)),
            ],
            out_specs=pl.BlockSpec((T_CHUNK, B_TILE, IN_p), lambda b, t: (t, b, 0)),
        ),
        compiler_params=par_params,
    )(h_all, w_out, b_out)

    # Strip padding and return batch-first like the PyTorch module.
    return jnp.transpose(y_tm[:L, :B, :IN], (1, 0, 2))


def reference_forward(x, params):
    """Pure-JAX reference matching PyTorch Linear + nn.GRU + Linear semantics."""
    B, L, IN = x.shape
    H = params["w_hh_t"].shape[0]
    e = x @ params["w_in_t"] + params["b_in"]        # (B, L, E)

    def step(h, e_t):
        gi = e_t @ params["w_ih_t"] + params["b_ih"]
        gh = h @ params["w_hh_t"] + params["b_hh"]
        r = jax.nn.sigmoid(gi[:, :H] + gh[:, :H])
        z = jax.nn.sigmoid(gi[:, H:2 * H] + gh[:, H:2 * H])
        n = jnp.tanh(gi[:, 2 * H:] + r * gh[:, 2 * H:])
        h_new = (1.0 - z) * n + z * h
        return h_new, h_new

    h0 = jnp.zeros((B, H), jnp.float32)
    _, hs = jax.lax.scan(step, h0, jnp.transpose(e, (1, 0, 2)))  # (L, B, H)
    hs = jnp.transpose(hs, (1, 0, 2))                            # (B, L, H)
    return hs @ params["w_out_t"] + params["b_out"]


def init_params(key, input_size, hidden_size, embed_size):
    ks = jax.random.split(key, 8)
    s = 0.1
    H, E, IN = hidden_size, embed_size, input_size
    # Stored pre-transposed: Linear weight (out, in) -> (in, out); biases as (1, out).
    return {
        "w_in_t":  (s * jax.random.normal(ks[0], (IN, E))).astype(jnp.float32),
        "b_in":    (s * jax.random.normal(ks[1], (1, E))).astype(jnp.float32),
        "w_ih_t":  (s * jax.random.normal(ks[2], (E, 3 * H))).astype(jnp.float32),
        "b_ih":    (s * jax.random.normal(ks[3], (1, 3 * H))).astype(jnp.float32),
        "w_hh_t":  (s * jax.random.normal(ks[4], (H, 3 * H))).astype(jnp.float32),
        "b_hh":    (s * jax.random.normal(ks[5], (1, 3 * H))).astype(jnp.float32),
        "w_out_t": (s * jax.random.normal(ks[6], (H, IN))).astype(jnp.float32),
        "b_out":   (s * jax.random.normal(ks[7], (1, IN))).astype(jnp.float32),
    }


if __name__ == "__main__":
    key = jax.random.PRNGKey(0)
    k_x, k_p = jax.random.split(key)

    B, L, INPUT_SIZE, HIDDEN = 2, 8, 4, 32
    EMBED = HIDDEN                                   # embed_size defaults to hidden_size

    x = jax.random.normal(k_x, (B, L, INPUT_SIZE), dtype=jnp.float32)
    params = init_params(k_p, INPUT_SIZE, HIDDEN, EMBED)

    out = jax.block_until_ready(rnn_w_continuous_input(x, params))
    ref = jax.block_until_ready(reference_forward(x, params))

    assert out.shape == (B, L, INPUT_SIZE)
    max_err = float(jnp.max(jnp.abs(out - ref)))
    assert jnp.allclose(out, ref, atol=1e-4, rtol=1e-3), max_err
    print("KERNEL_OK")
</pallas_src>

<mosaic_0001>
module attributes {stable_mosaic.version = 11 : i64} {
  func.func @input_proj_kernel(%arg0: i32, %arg1: i32, %arg2: memref<8x8x128xf32, #tpu.memory_space<vmem>>, %arg3: memref<128x128xf32, #tpu.memory_space<vmem>>, %arg4: memref<1x128xf32, #tpu.memory_space<vmem>>, %arg5: memref<128x384xf32, #tpu.memory_space<vmem>>, %arg6: memref<1x384xf32, #tpu.memory_space<vmem>>, %arg7: memref<8x8x384xf32, #tpu.memory_space<vmem>>) attributes {dimension_semantics = [#tpu.dimension_semantics<parallel>, #tpu.dimension_semantics<parallel>], iteration_bounds = array<i64: 1, 1>, scalar_prefetch = 0 : i64, scratch_operands = 0 : i64, tpu.core_type = #tpu.core_type<tc>, window_params = [{transform_indices = @transform_0, window_bounds = array<i64: 8, 8, 128>}, {pipeline_mode = #tpu.pipeline_mode<synchronous>, transform_indices = @transform_1, window_bounds = array<i64: 128, 128>}, {pipeline_mode = #tpu.pipeline_mode<synchronous>, transform_indices = @transform_2, window_bounds = array<i64: 1, 128>}, {pipeline_mode = #tpu.pipeline_mode<synchronous>, transform_indices = @transform_3, window_bounds = array<i64: 128, 384>}, {pipeline_mode = #tpu.pipeline_mode<synchronous>, transform_indices = @transform_4, window_bounds = array<i64: 1, 384>}, {transform_indices = @transform_5, window_bounds = array<i64: 8, 8, 384>}]} {
    %c0 = arith.constant 0 : index
    %c0_0 = arith.constant 0 : index
    %c0_1 = arith.constant 0 : index
    %0 = vector.load %arg2[%c0, %c0_0, %c0_1] : memref<8x8x128xf32, #tpu.memory_space<vmem>>, vector<8x8x128xf32>
    %1 = vector.shape_cast %0 : vector<8x8x128xf32> to vector<64x128xf32>
    %c0_2 = arith.constant 0 : index
    %c0_3 = arith.constant 0 : index
    %2 = vector.load %arg3[%c0_2, %c0_3] : memref<128x128xf32, #tpu.memory_space<vmem>>, vector<128x128xf32>
    %cst = arith.constant dense<0.000000e+00> : vector<64x128xf32>
    %3 = tpu.matmul %1, %2, %cst {dimension_numbers = #tpu.dot_dimension_numbers<[1], [0], [0], [1], [0, 0, 1, 1], [], []>, precision = #tpu.contract_precision<fp32>} : vector<64x128xf32>, vector<128x128xf32>, vector<64x128xf32> -> vector<64x128xf32>
    %c0_4 = arith.constant 0 : index
    %c0_5 = arith.constant 0 : index
    %4 = vector.load %arg4[%c0_4, %c0_5] : memref<1x128xf32, #tpu.memory_space<vmem>>, vector<1x128xf32>
    %5 = vector.broadcast %4 : vector<1x128xf32> to vector<64x128xf32>
    %6 = arith.addf %3, %5 : vector<64x128xf32>
    %c0_6 = arith.constant 0 : index
    %c0_7 = arith.constant 0 : index
    %7 = vector.load %arg5[%c0_6, %c0_7] : memref<128x384xf32, #tpu.memory_space<vmem>>, vector<128x384xf32>
    %cst_8 = arith.constant dense<0.000000e+00> : vector<64x384xf32>
    %8 = tpu.matmul %6, %7, %cst_8 {dimension_numbers = #tpu.dot_dimension_numbers<[1], [0], [0], [1], [0, 0, 1, 1], [], []>, precision = #tpu.contract_precision<fp32>} : vector<64x128xf32>, vector<128x384xf32>, vector<64x384xf32> -> vector<64x384xf32>
    %c0_9 = arith.constant 0 : index
    %c0_10 = arith.constant 0 : index
    %9 = vector.load %arg6[%c0_9, %c0_10] : memref<1x384xf32, #tpu.memory_space<vmem>>, vector<1x384xf32>
    %10 = vector.broadcast %9 : vector<1x384xf32> to vector<64x384xf32>
    %11 = arith.addf %8, %10 : vector<64x384xf32>
    %12 = vector.shape_cast %11 : vector<64x384xf32> to vector<8x8x384xf32>
    %c0_11 = arith.constant 0 : index
    %c0_12 = arith.constant 0 : index
    %c0_13 = arith.constant 0 : index
    %13 = vector.load %arg7[%c0_11, %c0_12, %c0_13] : memref<8x8x384xf32, #tpu.memory_space<vmem>>, vector<8x8x384xf32>
    tpu.vector_store %arg7[%c0_11, %c0_12, %c0_13], %12 {strides = array<i32>} : memref<8x8x384xf32, #tpu.memory_space<vmem>>, vector<8x8x384xf32>,
    return
  }
  func.func @transform_0(%arg0: i32, %arg1: i32) -> (i32, i32, i32) {
    %c0_i32 = arith.constant 0 : i32
    %c0_i32_0 = arith.constant 0 : i32
    return %arg1, %arg0, %c0_i32 : i32, i32, i32
  }
  func.func @transform_1(%arg0: i32, %arg1: i32) -> (i32, i32) {
    %c0_i32 = arith.constant 0 : i32
    %c0_i32_0 = arith.constant 0 : i32
    %c0_i32_1 = arith.constant 0 : i32
    return %c0_i32, %c0_i32_0 : i32, i32
  }
  func.func @transform_2(%arg0: i32, %arg1: i32) -> (i32, i32) {
    %c0_i32 = arith.constant 0 : i32
    %c0_i32_0 = arith.constant 0 : i32
    %c0_i32_1 = arith.constant 0 : i32
    return %c0_i32, %c0_i32_0 : i32, i32
  }
  func.func @transform_3(%arg0: i32, %arg1: i32) -> (i32, i32) {
    %c0_i32 = arith.constant 0 : i32
    %c0_i32_0 = arith.constant 0 : i32
    %c0_i32_1 = arith.constant 0 : i32
    return %c0_i32, %c0_i32_0 : i32, i32
  }
  func.func @transform_4(%arg0: i32, %arg1: i32) -> (i32, i32) {
    %c0_i32 = arith.constant 0 : i32
    %c0_i32_0 = arith.constant 0 : i32
    %c0_i32_1 = arith.constant 0 : i32
    return %c0_i32, %c0_i32_0 : i32, i32
  }
  func.func @transform_5(%arg0: i32, %arg1: i32) -> (i32, i32, i32) {
    %c0_i32 = arith.constant 0 : i32
    %c0_i32_0 = arith.constant 0 : i32
    return %arg1, %arg0, %c0_i32 : i32, i32, i32
  }
}

</mosaic_0001>

<llo_original>
// kernel: tpu_custom_call.1
$region0: #{tpu_custom_call.1}
  #allocation0 [shape = 'u32[]', space=smem, size = 0x4, offset = 0x4, fixed_abs, tag = 'smem constant byte address 0x4 - core index']
  #allocation1 [shape = 'u32[72,128]{1,0:T(1,128)}', space=vmem, size = 0x9000, scoped, tag = 'internal scratch']
  %s0 = inlined_call_operand.hbm [shape: f32[8,8,128], index: 0, kind: input, shape index: {}]
  %s1 = inlined_call_operand.hbm [shape: f32[128,128], index: 1, kind: input, shape index: {}]
  %s2 = inlined_call_operand.hbm [shape: f32[1,128], index: 2, kind: input, shape index: {}]
  %s3 = inlined_call_operand.hbm [shape: f32[128,384], index: 3, kind: input, shape index: {}]
  %s4 = inlined_call_operand.vmem [shape: f32[1,384], index: 4, kind: input, shape index: {}]
  %s5 = inlined_call_operand.hbm [shape: f32[8,8,384], index: 5, kind: output, shape index: {}]
  %s6 = sld [smem:[#allocation0]]
  $region46: #{tpu_custom_call.1} parent=0
    _
  %s8 = ssub.s32 1, %s6
  %s9 = scalar_select 0, %s8, %s6
  $region1: #{tpu_custom_call.1} parent=0
    #allocation2 [shape = 'u8[32768]{0}', space=vmem, size = 0x8000, scoped, tag = 'input window, operand 0, single buffered']
    #allocation3 [shape = 's32[1]{0}', space=sflag, size = 0x4, scoped, tag = 'scoped memory for tpu_custom_call.1']
    #allocation4 [shape = 's32[1]{0}', space=sflag, size = 0x4, scoped, tag = 'scoped memory for tpu_custom_call.1']
    #allocation5 [shape = 'u8[65536]{0}', space=vmem, size = 0x10000, scoped, tag = 'input window, operand 1, single buffered']
    #allocation6 [shape = 's32[1]{0}', space=sflag, size = 0x4, scoped, tag = 'scoped memory for tpu_custom_call.1']
    #allocation7 [shape = 'u8[512]{0}', space=vmem, size = 0x400, scoped, tag = 'input window, operand 2, single buffered']
    #allocation8 [shape = 'u8[196608]{0}', space=vmem, size = 0x30000, scoped, tag = 'input window, operand 3, single buffered']
    #allocation9 [shape = 's32[1]{0}', space=sflag, size = 0x4, scoped, tag = 'scoped memory for tpu_custom_call.1']
    #allocation10 [shape = 'u8[98304]{0}', space=vmem, size = 0x18000, scoped, tag = 'output window, operand 0, single buffered']
    %10 = vsyncpa [#allocation3], 0
    %11 = vsyncpa [#allocation6], 0
    %12 = vsyncpa [#allocation9], 0
    %13 = vsyncpa [#allocation4], 0
    // Predicated region
    $region2: #{tpu_custom_call.1} parent=1 // pred_check
      _
    $region3: #{tpu_custom_call.1} parent=1 // pred_check_branch
      %15 = sbr.rel (0) target = $region5
    $region4: #{tpu_custom_call.1} parent=1 // pred_region
      %17 = vsyncadd [#allocation3], 0
      %s18 = sshll.u32 %s0, 4
      %s19 = int_to_ptr.hbm [resolvable:$true] %s18
      %s20 = sshll.u32 [#allocation2], 4
      %s21 = int_to_ptr.vmem [resolvable:$true] %s20
      %26 = dma.hbm_to_vmem [thread:$0]  %s19, 1024, %s21, [#allocation3], 128, 128, 8
    $region5: #{tpu_custom_call.1} parent=1 // pred_fallthru
      _
    // Predicated region
    $region6: #{tpu_custom_call.1} parent=1 // pred_check
      _
    $region7: #{tpu_custom_call.1} parent=1 // pred_check_branch
      %28 = sbr.rel (0) target = $region9
    $region8: #{tpu_custom_call.1} parent=1 // pred_region
      %30 = vsyncadd [#allocation6], 0
      %s31 = sshll.u32 %s1, 4
      %s32 = int_to_ptr.hbm [resolvable:$true] %s31
      %s33 = sshll.u32 [#allocation5], 4
      %s34 = int_to_ptr.vmem [resolvable:$true] %s33
      %39 = dma.hbm_to_vmem [thread:$0]  %s32, 2048, %s34, [#allocation6], 128, 128, 8
    $region9: #{tpu_custom_call.1} parent=1 // pred_fallthru
      _
    // Predicated region
    $region10: #{tpu_custom_call.1} parent=1 // pred_check
      _
    $region11: #{tpu_custom_call.1} parent=1 // pred_check_branch
      %41 = sbr.rel (0) target = $region13
    $region12: #{tpu_custom_call.1} parent=1 // pred_region
      %43 = vsyncadd [#allocation6], 0
      %s45 = sshll.u32 %s2, 4
      %s46 = int_to_ptr.hbm [resolvable:$true] %s45
      %s47 = sshll.u32 [#allocation7], 4
      %s48 = int_to_ptr.vmem [resolvable:$true] %s47
      %50 = dma.hbm_to_vmem [thread:$0]  %s46, 16, %s48, [#allocation6]
    $region13: #{tpu_custom_call.1} parent=1 // pred_fallthru
      _
    // Predicated region
    $region14: #{tpu_custom_call.1} parent=1 // pred_check
      _
    $region15: #{tpu_custom_call.1} parent=1 // pred_check_branch
      %52 = sbr.rel (0) target = $region17
    $region16: #{tpu_custom_call.1} parent=1 // pred_region
      %54 = vsyncadd [#allocation9], 0
      %s55 = sshll.u32 %s3, 4
      %s56 = int_to_ptr.hbm [resolvable:$true] %s55
      %s57 = sshll.u32 [#allocation8], 4
      %s58 = int_to_ptr.vmem [resolvable:$true] %s57
      %63 = dma.hbm_to_vmem [thread:$0]  %s56, 6144, %s58, [#allocation9], 384, 384, 24
    $region17: #{tpu_custom_call.1} parent=1 // pred_fallthru
      _
    // Predicated region
    $region18: #{tpu_custom_call.1} parent=1 // pred_check
      _
    $region19: #{tpu_custom_call.1} parent=1 // pred_check_branch
      %65 = sbr.rel (0) target = $region21
    $region20: #{tpu_custom_call.1} parent=1 // pred_region
      _
    $region21: #{tpu_custom_call.1} parent=1 // pred_fallthru
      _
    // Predicated region
    $region22: #{tpu_custom_call.1} parent=1 // pred_check
      _
    $region23: #{tpu_custom_call.1} parent=1 // pred_check_branch
      %67 = sbr.rel (0) target = $region25
    $region24: #{tpu_custom_call.1} parent=1 // pred_region
      %69 = dma.done [#allocation3], 1024
    $region25: #{tpu_custom_call.1} parent=1 // pred_fallthru
      _
    // Predicated region
    $region26: #{tpu_custom_call.1} parent=1 // pred_check
      _
    $region27: #{tpu_custom_call.1} parent=1 // pred_check_branch
      %71 = sbr.rel (0) target = $region29
    $region28: #{tpu_custom_call.1} parent=1 // pred_region
      %73 = dma.done [#allocation6], 2048
    $region29: #{tpu_custom_call.1} parent=1 // pred_fallthru
      _
    // Predicated region
    $region30: #{tpu_custom_call.1} parent=1 // pred_check
      _
    $region31: #{tpu_custom_call.1} parent=1 // pred_check_branch
      %75 = sbr.rel (0) target = $region33
    $region32: #{tpu_custom_call.1} parent=1 // pred_region
      %77 = dma.done [#allocation6], 16
    $region33: #{tpu_custom_call.1} parent=1 // pred_fallthru
      _
    // Predicated region
    $region34: #{tpu_custom_call.1} parent=1 // pred_check
      _
    $region35: #{tpu_custom_call.1} parent=1 // pred_check_branch
      %79 = sbr.rel (0) target = $region37
    $region36: #{tpu_custom_call.1} parent=1 // pred_region
      %81 = dma.done [#allocation9], 6144
    $region37: #{tpu_custom_call.1} parent=1 // pred_fallthru
      _
    %v82 = vld [vmem:[#allocation2] sm:$0xff]
    %v83 = vld [vmem:[#allocation2 + $0x8] sm:$0xff]
    %v84 = vld [vmem:[#allocation2 + $0x10] sm:$0xff]
    %v85 = vld [vmem:[#allocation2 + $0x18] sm:$0xff]
    %v86 = vld [vmem:[#allocation2 + $0x20] sm:$0xff]
    %v87 = vld [vmem:[#allocation2 + $0x28] sm:$0xff]
    %v88 = vld [vmem:[#allocation2 + $0x30] sm:$0xff]
    %v89 = vld [vmem:[#allocation2 + $0x38] sm:$0xff]
    %v90 = vld [vmem:[#allocation5] sm:$0xff]
    %v91 = vld [vmem:[#allocation5 + $0x8] sm:$0xff]
    %v92 = vld [vmem:[#allocation5 + $0x10] sm:$0xff]
    %v93 = vld [vmem:[#allocation5 + $0x18] sm:$0xff]
    %v94 = vld [vmem:[#allocation5 + $0x20] sm:$0xff]
    %v95 = vld [vmem:[#allocation5 + $0x28] sm:$0xff]
    %v96 = vld [vmem:[#allocation5 + $0x30] sm:$0xff]
    %v97 = vld [vmem:[#allocation5 + $0x38] sm:$0xff]
    %v98 = vld [vmem:[#allocation5 + $0x40] sm:$0xff]
    %v99 = vld [vmem:[#allocation5 + $0x48] sm:$0xff]
    %v100 = vld [vmem:[#allocation5 + $0x50] sm:$0xff]
    %v101 = vld [vmem:[#allocation5 + $0x58] sm:$0xff]
    %v102 = vld [vmem:[#allocation5 + $0x60] sm:$0xff]
    %v103 = vld [vmem:[#allocation5 + $0x68] sm:$0xff]
    %v104 = vld [vmem:[#allocation5 + $0x70] sm:$0xff]
    %v105 = vld [vmem:[#allocation5 + $0x78] sm:$0xff]
    %v106 = vld [vmem:[#allocation7] sm:$0x1]
    %v108 = vperm.slane %v106, 0
    %v110 = vand.u32 %v105, 4294901760
    %111 = vmatpush.msra.mxu0 %v110
    %v112 = vand.u32 %v104, 4294901760
    %113 = vmatpush.msra.mxu0 %v112
    %v114 = vand.u32 %v103, 4294901760
    %115 = vmatpush.msra.mxu0 %v114
    %v116 = vand.u32 %v102, 4294901760
    %117 = vmatpush.msra.mxu0 %v116
    %v118 = vand.u32 %v101, 4294901760
    %119 = vmatpush.msra.mxu0 %v118
    %v120 = vand.u32 %v100, 4294901760
    %121 = vmatpush.msra.mxu0 %v120
    %v122 = vand.u32 %v99, 4294901760
    %123 = vmatpush.msra.mxu0 %v122
    %v124 = vand.u32 %v98, 4294901760
    %125 = vmatpush.msra.mxu0 %v124
    %v126 = vand.u32 %v97, 4294901760
    %127 = vmatpush.msra.mxu0 %v126
    %v128 = vand.u32 %v96, 4294901760
    %129 = vmatpush.msra.mxu0 %v128
    %v130 = vand.u32 %v95, 4294901760
    %131 = vmatpush.msra.mxu0 %v130
    %v132 = vand.u32 %v94, 4294901760
    %133 = vmatpush.msra.mxu0 %v132
    %v134 = vand.u32 %v93, 4294901760
    %135 = vmatpush.msra.mxu0 %v134
    %v136 = vand.u32 %v92, 4294901760
    %137 = vmatpush.msra.mxu0 %v136
    %v138 = vand.u32 %v91, 4294901760
    %139 = vmatpush.msra.mxu0 %v138
    %v140 = vand.u32 %v90, 4294901760
    %141 = vmatpush.msra.mxu0 %v140
    %v142 = vand.u32 %v82, 4294901760
    %v143 = vsub.f32 %v82, %v142
    %v144 = vand.u32 %v143, 4294901760
    %v145 = vsub.f32 %v143, %v144
    %v146 = vand.u32 %v145, 4294901760
    %147 = vmatmul.f32.gmra.mxu0 %v146
    %v148 = vpop.f32.mrf.mxu0
    %v149 = vadd.f32 %v108, %v148
    %v150 = vand.u32 %v83, 4294901760
    %v151 = vsub.f32 %v83, %v150
    %v152 = vand.u32 %v151, 4294901760
    %v153 = vsub.f32 %v151, %v152
    %v154 = vand.u32 %v153, 4294901760
    %155 = vmatmul.f32.gmra.mxu0 %v154
    %v156 = vpop.f32.mrf.mxu0
    %v157 = vadd.f32 %v108, %v156
    %v158 = vand.u32 %v84, 4294901760
    %v159 = vsub.f32 %v84, %v158
    %v160 = vand.u32 %v159, 4294901760
    %v161 = vsub.f32 %v159, %v160
    %v162 = vand.u32 %v161, 4294901760
    %163 = vmatmul.f32.gmra.mxu0 %v162
    %v164 = vpop.f32.mrf.mxu0
    %v165 = vadd.f32 %v108, %v164
    %v166 = vand.u32 %v85, 4294901760
    %v167 = vsub.f32 %v85, %v166
    %v168 = vand.u32 %v167, 4294901760
    %v169 = vsub.f32 %v167, %v168
    %v170 = vand.u32 %v169, 4294901760
    %171 = vmatmul.f32.gmra.mxu0 %v170
    %v172 = vpop.f32.mrf.mxu0
    %v173 = vadd.f32 %v108, %v172
    %v174 = vand.u32 %v86, 4294901760
    %v175 = vsub.f32 %v86, %v174
    %v176 = vand.u32 %v175, 4294901760
    %v177 = vsub.f32 %v175, %v176
    %v178 = vand.u32 %v177, 4294901760
    %179 = vmatmul.f32.gmra.mxu0 %v178
    %v180 = vpop.f32.mrf.mxu0
    %v181 = vadd.f32 %v108, %v180
    %v182 = vand.u32 %v87, 4294901760
    %v183 = vsub.f32 %v87, %v182
    %v184 = vand.u32 %v183, 4294901760
    %v185 = vsub.f32 %v183, %v184
    %v186 = vand.u32 %v185, 4294901760
    %187 = vmatmul.f32.gmra.mxu0 %v186
    %v188 = vpop.f32.mrf.mxu0
    %v189 = vadd.f32 %v108, %v188
    %v190 = vand.u32 %v88, 4294901760
    %v191 = vsub.f32 %v88, %v190
    %v192 = vand.u32 %v191, 4294901760
    %v193 = vsub.f32 %v191, %v192
    %v194 = vand.u32 %v193, 4294901760
    %195 = vmatmul.f32.gmra.mxu0 %v194
    %v196 = vpop.f32.mrf.mxu0
    %v197 = vadd.f32 %v108, %v196
    %v198 = vand.u32 %v89, 4294901760
    %v199 = vsub.f32 %v89, %v198
    %v200 = vand.u32 %v199, 4294901760
    %v201 = vsub.f32 %v199, %v200
    %v202 = vand.u32 %v201, 4294901760
    %203 = vmatmul.f32.gmra.mxu0 %v202
    %v204 = vpop.f32.mrf.mxu0
    %v205 = vadd.f32 %v108, %v204
    %206 = vdwg.mxu0
    %v207 = vand.u32 %v105, 4294901760
    %v208 = vsub.f32 %v105, %v207
    %v209 = vand.u32 %v208, 4294901760
    %v210 = vsub.f32 %v208, %v209
    %v211 = vand.u32 %v210, 4294901760
    %212 = vmatpush.msra.mxu0 %v211
    %v213 = vand.u32 %v104, 4294901760
    %v214 = vsub.f32 %v104, %v213
    %v215 = vand.u32 %v214, 4294901760
    %v216 = vsub.f32 %v214, %v215
    %v217 = vand.u32 %v216, 4294901760
    %218 = vmatpush.msra.mxu0 %v217
    %v219 = vand.u32 %v103, 4294901760
    %v220 = vsub.f32 %v103, %v219
    %v221 = vand.u32 %v220, 4294901760
    %v222 = vsub.f32 %v220, %v221
    %v223 = vand.u32 %v222, 4294901760
    %224 = vmatpush.msra.mxu0 %v223
    %v225 = vand.u32 %v102, 4294901760
    %v226 = vsub.f32 %v102, %v225
    %v227 = vand.u32 %v226, 4294901760
    %v228 = vsub.f32 %v226, %v227
    %v229 = vand.u32 %v228, 4294901760
    %230 = vmatpush.msra.mxu0 %v229
    %v231 = vand.u32 %v101, 4294901760
    %v232 = vsub.f32 %v101, %v231
    %v233 = vand.u32 %v232, 4294901760
    %v234 = vsub.f32 %v232, %v233
    %v235 = vand.u32 %v234, 4294901760
    %236 = vmatpush.msra.mxu0 %v235
    %v237 = vand.u32 %v100, 4294901760
    %v238 = vsub.f32 %v100, %v237
    %v239 = vand.u32 %v238, 4294901760
    %v240 = vsub.f32 %v238, %v239
    %v241 = vand.u32 %v240, 4294901760
    %242 = vmatpush.msra.mxu0 %v241
    %v243 = vand.u32 %v99, 4294901760
    %v244 = vsub.f32 %v99, %v243
    %v245 = vand.u32 %v244, 4294901760
    %v246 = vsub.f32 %v244, %v245
    %v247 = vand.u32 %v246, 4294901760
    %248 = vmatpush.msra.mxu0 %v247
    %v249 = vand.u32 %v98, 4294901760
    %v250 = vsub.f32 %v98, %v249
    %v251 = vand.u32 %v250, 4294901760
    %v252 = vsub.f32 %v250, %v251
    %v253 = vand.u32 %v252, 4294901760
    %254 = vmatpush.msra.mxu0 %v253
    %v255 = vand.u32 %v97, 4294901760
    %v256 = vsub.f32 %v97, %v255
    %v257 = vand.u32 %v256, 4294901760
    %v258 = vsub.f32 %v256, %v257
    %v259 = vand.u32 %v258, 4294901760
    %260 = vmatpush.msra.mxu0 %v259
    %v261 = vand.u32 %v96, 4294901760
    %v262 = vsub.f32 %v96, %v261
    %v263 = vand.u32 %v262, 4294901760
    %v264 = vsub.f32 %v262, %v263
    %v265 = vand.u32 %v264, 4294901760
    %266 = vmatpush.msra.mxu0 %v265
    %v267 = vand.u32 %v95, 4294901760
    %v268 = vsub.f32 %v95, %v267
    %v269 = vand.u32 %v268, 4294901760
    %v270 = vsub.f32 %v268, %v269
    %v271 = vand.u32 %v270, 4294901760
    %272 = vmatpush.msra.mxu0 %v271
    %v273 = vand.u32 %v94, 4294901760
    %v274 = vsub.f32 %v94, %v273
    %v275 = vand.u32 %v274, 4294901760
    %v276 = vsub.f32 %v274, %v275
    %v277 = vand.u32 %v276, 4294901760
    %278 = vmatpush.msra.mxu0 %v277
    %v279 = vand.u32 %v93, 4294901760
    %v280 = vsub.f32 %v93, %v279
    %v281 = vand.u32 %v280, 4294901760
    %v282 = vsub.f32 %v280, %v281
    %v283 = vand.u32 %v282, 4294901760
    %284 = vmatpush.msra.mxu0 %v283
    %v285 = vand.u32 %v92, 4294901760
    %v286 = vsub.f32 %v92, %v285
    %v287 = vand.u32 %v286, 4294901760
    %v288 = vsub.f32 %v286, %v287
    %v289 = vand.u32 %v288, 4294901760
    %290 = vmatpush.msra.mxu0 %v289
    %v291 = vand.u32 %v91, 4294901760
    %v292 = vsub.f32 %v91, %v291
    %v293 = vand.u32 %v292, 4294901760
    %v294 = vsub.f32 %v292, %v293
    %v295 = vand.u32 %v294, 4294901760
    %296 = vmatpush.msra.mxu0 %v295
    %v297 = vand.u32 %v90, 4294901760
    %v298 = vsub.f32 %v90, %v297
    %v299 = vand.u32 %v298, 4294901760
    %v300 = vsub.f32 %v298, %v299
    %v301 = vand.u32 %v300, 4294901760
    %302 = vmatpush.msra.mxu0 %v301
    %v303 = vand.u32 %v82, 4294901760
    %304 = vmatmul.f32.gmra.mxu0 %v303
    %v305 = vpop.f32.mrf.mxu0
    %v306 = vadd.f32 %v149, %v305
    %v307 = vand.u32 %v83, 4294901760
    %308 = vmatmul.f32.gmra.mxu0 %v307
    %v309 = vpop.f32.mrf.mxu0
    %v310 = vadd.f32 %v157, %v309
    %v311 = vand.u32 %v84, 4294901760
    %312 = vmatmul.f32.gmra.mxu0 %v311
    %v313 = vpop.f32.mrf.mxu0
    %v314 = vadd.f32 %v165, %v313
    %v315 = vand.u32 %v85, 4294901760
    %316 = vmatmul.f32.gmra.mxu0 %v315
    %v317 = vpop.f32.mrf.mxu0
    %v318 = vadd.f32 %v173, %v317
    %v319 = vand.u32 %v86, 4294901760
    %320 = vmatmul.f32.gmra.mxu0 %v319
    %v321 = vpop.f32.mrf.mxu0
    %v322 = vadd.f32 %v181, %v321
    %v323 = vand.u32 %v87, 4294901760
    %324 = vmatmul.f32.gmra.mxu0 %v323
    %v325 = vpop.f32.mrf.mxu0
    %v326 = vadd.f32 %v189, %v325
    %v327 = vand.u32 %v88, 4294901760
    %328 = vmatmul.f32.gmra.mxu0 %v327
    %v329 = vpop.f32.mrf.mxu0
    %v330 = vadd.f32 %v197, %v329
    %v331 = vand.u32 %v89, 4294901760
    %332 = vmatmul.f32.gmra.mxu0 %v331
    %v333 = vpop.f32.mrf.mxu0
    %v334 = vadd.f32 %v205, %v333
    %335 = vdwg.mxu0
    %v336 = vand.u32 %v105, 4294901760
    %v337 = vsub.f32 %v105, %v336
    %338 = vmatpush.msra.mxu0 %v337
    %v339 = vand.u32 %v104, 4294901760
    %v340 = vsub.f32 %v104, %v339
    %341 = vmatpush.msra.mxu0 %v340
    %v342 = vand.u32 %v103, 4294901760
    %v343 = vsub.f32 %v103, %v342
    %344 = vmatpush.msra.mxu0 %v343
    %v345 = vand.u32 %v102, 4294901760
    %v346 = vsub.f32 %v102, %v345
    %347 = vmatpush.msra.mxu0 %v346
    %v348 = vand.u32 %v101, 4294901760
    %v349 = vsub.f32 %v101, %v348
    %350 = vmatpush.msra.mxu0 %v349
    %v351 = vand.u32 %v100, 4294901760
    %v352 = vsub.f32 %v100, %v351
    %353 = vmatpush.msra.mxu0 %v352
    %v354 = vand.u32 %v99, 4294901760
    %v355 = vsub.f32 %v99, %v354
    %356 = vmatpush.msra.mxu0 %v355
    %v357 = vand.u32 %v98, 4294901760
    %v358 = vsub.f32 %v98, %v357
    %359 = vmatpush.msra.mxu0 %v358
    %v360 = vand.u32 %v97, 4294901760
    %v361 = vsub.f32 %v97, %v360
    %362 = vmatpush.msra.mxu0 %v361
    %v363 = vand.u32 %v96, 4294901760
    %v364 = vsub.f32 %v96, %v363
    %365 = vmatpush.msra.mxu0 %v364
    %v366 = vand.u32 %v95, 4294901760
    %v367 = vsub.f32 %v95, %v366
    %368 = vmatpush.msra.mxu0 %v367
    %v369 = vand.u32 %v94, 4294901760
    %v370 = vsub.f32 %v94, %v369
    %371 = vmatpush.msra.mxu0 %v370
    %v372 = vand.u32 %v93, 4294901760
    %v373 = vsub.f32 %v93, %v372
    %374 = vmatpush.msra.mxu0 %v373
    %v375 = vand.u32 %v92, 4294901760
    %v376 = vsub.f32 %v92, %v375
    %377 = vmatpush.msra.mxu0 %v376
    %v378 = vand.u32 %v91, 4294901760
    %v379 = vsub.f32 %v91, %v378
    %380 = vmatpush.msra.mxu0 %v379
    %v381 = vand.u32 %v90, 4294901760
    %v382 = vsub.f32 %v90, %v381
    %383 = vmatpush.msra.mxu0 %v382
    %v384 = vand.u32 %v82, 4294901760
    %v385 = vsub.f32 %v82, %v384
    %386 = vmatmul.f32.gmra.mxu0 %v385
    %v387 = vpop.f32.mrf.mxu0
    %v388 = vadd.f32 %v306, %v387
    %v389 = vand.u32 %v83, 4294901760
    %v390 = vsub.f32 %v83, %v389
    %391 = vmatmul.f32.gmra.mxu0 %v390
    %v392 = vpop.f32.mrf.mxu0
    %v393 = vadd.f32 %v310, %v392
    %v394 = vand.u32 %v84, 4294901760
    %v395 = vsub.f32 %v84, %v394
    %396 = vmatmul.f32.gmra.mxu0 %v395
    %v397 = vpop.f32.mrf.mxu0
    %v398 = vadd.f32 %v314, %v397
    %v399 = vand.u32 %v85, 4294901760
    %v400 = vsub.f32 %v85, %v399
    %401 = vmatmul.f32.gmra.mxu0 %v400
    %v402 = vpop.f32.mrf.mxu0
    %v403 = vadd.f32 %v318, %v402
    %v404 = vand.u32 %v86, 4294901760
    %v405 = vsub.f32 %v86, %v404
    %406 = vmatmul.f32.gmra.mxu0 %v405
    %v407 = vpop.f32.mrf.mxu0
    %v408 = vadd.f32 %v322, %v407
    %v409 = vand.u32 %v87, 4294901760
    %v410 = vsub.f32 %v87, %v409
    %411 = vmatmul.f32.gmra.mxu0 %v410
    %v412 = vpop.f32.mrf.mxu0
    %v413 = vadd.f32 %v326, %v412
    %v414 = vand.u32 %v88, 4294901760
    %v415 = vsub.f32 %v88, %v414
    %416 = vmatmul.f32.gmra.mxu0 %v415
    %v417 = vpop.f32.mrf.mxu0
    %v418 = vadd.f32 %v330, %v417
    %v419 = vand.u32 %v89, 4294901760
    %v420 = vsub.f32 %v89, %v419
    %421 = vmatmul.f32.gmra.mxu0 %v420
    %v422 = vpop.f32.mrf.mxu0
    %v423 = vadd.f32 %v334, %v422
    %424 = vdwg.mxu0
    %v425 = vand.u32 %v105, 4294901760
    %426 = vmatpush.msra.mxu0 %v425
    %v427 = vand.u32 %v104, 4294901760
    %428 = vmatpush.msra.mxu0 %v427
    %v429 = vand.u32 %v103, 4294901760
    %430 = vmatpush.msra.mxu0 %v429
    %v431 = vand.u32 %v102, 4294901760
    %432 = vmatpush.msra.mxu0 %v431
    %v433 = vand.u32 %v101, 4294901760
    %434 = vmatpush.msra.mxu0 %v433
    %v435 = vand.u32 %v100, 4294901760
    %436 = vmatpush.msra.mxu0 %v435
    %v437 = vand.u32 %v99, 4294901760
    %438 = vmatpush.msra.mxu0 %v437
    %v439 = vand.u32 %v98, 4294901760
    %440 = vmatpush.msra.mxu0 %v439
    %v441 = vand.u32 %v97, 4294901760
    %442 = vmatpush.msra.mxu0 %v441
    %v443 = vand.u32 %v96, 4294901760
    %444 = vmatpush.msra.mxu0 %v443
    %v445 = vand.u32 %v95, 4294901760
    %446 = vmatpush.msra.mxu0 %v445
    %v447 = vand.u32 %v94, 4294901760
    %448 = vmatpush.msra.mxu0 %v447
    %v449 = vand.u32 %v93, 4294901760
    %450 = vmatpush.msra.mxu0 %v449
    %v451 = vand.u32 %v92, 4294901760
    %452 = vmatpush.msra.mxu0 %v451
    %v453 = vand.u32 %v91, 4294901760
    %454 = vmatpush.msra.mxu0 %v453
    %v455 = vand.u32 %v90, 4294901760
    %456 = vmatpush.msra.mxu0 %v455
    %v457 = vand.u32 %v82, 4294901760
    %v458 = vsub.f32 %v82, %v457
    %v459 = vand.u32 %v458, 4294901760
    %460 = vmatmul.f32.gmra.mxu0 %v459
    %v461 = vpop.f32.mrf.mxu0
    %v462 = vadd.f32 %v388, %v461
    %v463 = vand.u32 %v83, 4294901760
    %v464 = vsub.f32 %v83, %v463
    %v465 = vand.u32 %v464, 4294901760
    %466 = vmatmul.f32.gmra.mxu0 %v465
    %v467 = vpop.f32.mrf.mxu0
    %v468 = vadd.f32 %v393, %v467
    %v469 = vand.u32 %v84, 4294901760
    %v470 = vsub.f32 %v84, %v469
    %v471 = vand.u32 %v470, 4294901760
    %472 = vmatmul.f32.gmra.mxu0 %v471
    %v473 = vpop.f32.mrf.mxu0
    %v474 = vadd.f32 %v398, %v473
    %v475 = vand.u32 %v85, 4294901760
    %v476 = vsub.f32 %v85, %v475
    %v477 = vand.u32 %v476, 4294901760
    %478 = vmatmul.f32.gmra.mxu0 %v477
    %v479 = vpop.f32.mrf.mxu0
    %v480 = vadd.f32 %v403, %v479
    %v481 = vand.u32 %v86, 4294901760
    %v482 = vsub.f32 %v86, %v481
    %v483 = vand.u32 %v482, 4294901760
    %484 = vmatmul.f32.gmra.mxu0 %v483
    %v485 = vpop.f32.mrf.mxu0
    %v486 = vadd.f32 %v408, %v485
    %v487 = vand.u32 %v87, 4294901760
    %v488 = vsub.f32 %v87, %v487
    %v489 = vand.u32 %v488, 4294901760
    %490 = vmatmul.f32.gmra.mxu0 %v489
    %v491 = vpop.f32.mrf.mxu0
    %v492 = vadd.f32 %v413, %v491
    %v493 = vand.u32 %v88, 4294901760
    %v494 = vsub.f32 %v88, %v493
    %v495 = vand.u32 %v494, 4294901760
    %496 = vmatmul.f32.gmra.mxu0 %v495
    %v497 = vpop.f32.mrf.mxu0
    %v498 = vadd.f32 %v418, %v497
    %v499 = vand.u32 %v89, 4294901760
    %v500 = vsub.f32 %v89, %v499
    %v501 = vand.u32 %v500, 4294901760
    %502 = vmatmul.f32.gmra.mxu0 %v501
    %v503 = vpop.f32.mrf.mxu0
    %v504 = vadd.f32 %v423, %v503
    %505 = vdwg.mxu0
    %v506 = vand.u32 %v105, 4294901760
    %v507 = vsub.f32 %v105, %v506
    %v508 = vand.u32 %v507, 4294901760
    %509 = vmatpush.msra.mxu0 %v508
    %v510 = vand.u32 %v104, 4294901760
    %v511 = vsub.f32 %v104, %v510
    %v512 = vand.u32 %v511, 4294901760
    %513 = vmatpush.msra.mxu0 %v512
    %v514 = vand.u32 %v103, 4294901760
    %v515 = vsub.f32 %v103, %v514
    %v516 = vand.u32 %v515, 4294901760
    %517 = vmatpush.msra.mxu0 %v516
    %v518 = vand.u32 %v102, 4294901760
    %v519 = vsub.f32 %v102, %v518
    %v520 = vand.u32 %v519, 4294901760
    %521 = vmatpush.msra.mxu0 %v520
    %v522 = vand.u32 %v101, 4294901760
    %v523 = vsub.f32 %v101, %v522
    %v524 = vand.u32 %v523, 4294901760
    %525 = vmatpush.msra.mxu0 %v524
    %v526 = vand.u32 %v100, 4294901760
    %v527 = vsub.f32 %v100, %v526
    %v528 = vand.u32 %v527, 4294901760
    %529 = vmatpush.msra.mxu0 %v528
    %v530 = vand.u32 %v99, 4294901760
    %v531 = vsub.f32 %v99, %v530
    %v532 = vand.u32 %v531, 4294901760
    %533 = vmatpush.msra.mxu0 %v532
    %v534 = vand.u32 %v98, 4294901760
    %v535 = vsub.f32 %v98, %v534
    %v536 = vand.u32 %v535, 4294901760
    %537 = vmatpush.msra.mxu0 %v536
    %v538 = vand.u32 %v97, 4294901760
    %v539 = vsub.f32 %v97, %v538
    %v540 = vand.u32 %v539, 4294901760
    %541 = vmatpush.msra.mxu0 %v540
    %v542 = vand.u32 %v96, 4294901760
    %v543 = vsub.f32 %v96, %v542
    %v544 = vand.u32 %v543, 4294901760
    %545 = vmatpush.msra.mxu0 %v544
    %v546 = vand.u32 %v95, 4294901760
    %v547 = vsub.f32 %v95, %v546
    %v548 = vand.u32 %v547, 4294901760
    %549 = vmatpush.msra.mxu0 %v548
    %v550 = vand.u32 %v94, 4294901760
    %v551 = vsub.f32 %v94, %v550
    %v552 = vand.u32 %v551, 4294901760
    %553 = vmatpush.msra.mxu0 %v552
    %v554 = vand.u32 %v93, 4294901760
    %v555 = vsub.f32 %v93, %v554
    %v556 = vand.u32 %v555, 4294901760
    %557 = vmatpush.msra.mxu0 %v556
    %v558 = vand.u32 %v92, 4294901760
    %v559 = vsub.f32 %v92, %v558
    %v560 = vand.u32 %v559, 4294901760
    %561 = vmatpush.msra.mxu0 %v560
    %v562 = vand.u32 %v91, 4294901760
    %v563 = vsub.f32 %v91, %v562
    %v564 = vand.u32 %v563, 4294901760
    %565 = vmatpush.msra.mxu0 %v564
    %v566 = vand.u32 %v90, 4294901760
    %v567 = vsub.f32 %v90, %v566
    %v568 = vand.u32 %v567, 4294901760
    %569 = vmatpush.msra.mxu0 %v568
    %v570 = vand.u32 %v82, 4294901760
    %571 = vmatmul.f32.gmra.mxu0 %v570
    %v572 = vpop.f32.mrf.mxu0
    %v573 = vadd.f32 %v462, %v572
    %v574 = vand.u32 %v83, 4294901760
    %575 = vmatmul.f32.gmra.mxu0 %v574
    %v576 = vpop.f32.mrf.mxu0
    %v577 = vadd.f32 %v468, %v576
    %v578 = vand.u32 %v84, 4294901760
    %579 = vmatmul.f32.gmra.mxu0 %v578
    %v580 = vpop.f32.mrf.mxu0
    %v581 = vadd.f32 %v474, %v580
    %v582 = vand.u32 %v85, 4294901760
    %583 = vmatmul.f32.gmra.mxu0 %v582
    %v584 = vpop.f32.mrf.mxu0
    %v585 = vadd.f32 %v480, %v584
    %v586 = vand.u32 %v86, 4294901760
    %587 = vmatmul.f32.gmra.mxu0 %v586
    %v588 = vpop.f32.mrf.mxu0
    %v589 = vadd.f32 %v486, %v588
    %v590 = vand.u32 %v87, 4294901760
    %591 = vmatmul.f32.gmra.mxu0 %v590
    %v592 = vpop.f32.mrf.mxu0
    %v593 = vadd.f32 %v492, %v592
    %v594 = vand.u32 %v88, 4294901760
    %595 = vmatmul.f32.gmra.mxu0 %v594
    %v596 = vpop.f32.mrf.mxu0
    %v597 = vadd.f32 %v498, %v596
    %v598 = vand.u32 %v89, 4294901760
    %599 = vmatmul.f32.gmra.mxu0 %v598
    %v600 = vpop.f32.mrf.mxu0
    %v601 = vadd.f32 %v504, %v600
    %602 = vdwg.mxu0
    %v603 = vand.u32 %v105, 4294901760
    %604 = vmatpush.msra.mxu0 %v603
    %v605 = vand.u32 %v104, 4294901760
    %606 = vmatpush.msra.mxu0 %v605
    %v607 = vand.u32 %v103, 4294901760
    %608 = vmatpush.msra.mxu0 %v607
    %v609 = vand.u32 %v102, 4294901760
    %610 = vmatpush.msra.mxu0 %v609
    %v611 = vand.u32 %v101, 4294901760
    %612 = vmatpush.msra.mxu0 %v611
    %v613 = vand.u32 %v100, 4294901760
    %614 = vmatpush.msra.mxu0 %v613
    %v615 = vand.u32 %v99, 4294901760
    %616 = vmatpush.msra.mxu0 %v615
    %v617 = vand.u32 %v98, 4294901760
    %618 = vmatpush.msra.mxu0 %v617
    %v619 = vand.u32 %v97, 4294901760
    %620 = vmatpush.msra.mxu0 %v619
    %v621 = vand.u32 %v96, 4294901760
    %622 = vmatpush.msra.mxu0 %v621
    %v623 = vand.u32 %v95, 4294901760
    %624 = vmatpush.msra.mxu0 %v623
    %v625 = vand.u32 %v94, 4294901760
    %626 = vmatpush.msra.mxu0 %v625
    %v627 = vand.u32 %v93, 4294901760
    %628 = vmatpush.msra.mxu0 %v627
    %v629 = vand.u32 %v92, 4294901760
    %630 = vmatpush.msra.mxu0 %v629
    %v631 = vand.u32 %v91, 4294901760
    %632 = vmatpush.msra.mxu0 %v631
    %v633 = vand.u32 %v90, 4294901760
    %634 = vmatpush.msra.mxu0 %v633
    %v635 = vand.u32 %v82, 4294901760
    %636 = vmatmul.f32.gmra.mxu0 %v635
    %v637 = vpop.f32.mrf.mxu0
    %v638 = vadd.f32 %v573, %v637
    %v639 = vand.u32 %v83, 4294901760
    %640 = vmatmul.f32.gmra.mxu0 %v639
    %v641 = vpop.f32.mrf.mxu0
    %v642 = vadd.f32 %v577, %v641
    %v643 = vand.u32 %v84, 4294901760
    %644 = vmatmul.f32.gmra.mxu0 %v643
    %v645 = vpop.f32.mrf.mxu0
    %v646 = vadd.f32 %v581, %v645
    %v647 = vand.u32 %v85, 4294901760
    %648 = vmatmul.f32.gmra.mxu0 %v647
    %v649 = vpop.f32.mrf.mxu0
    %v650 = vadd.f32 %v585, %v649
    %v651 = vand.u32 %v86, 4294901760
    %652 = vmatmul.f32.gmra.mxu0 %v651
    %v653 = vpop.f32.mrf.mxu0
    %v654 = vadd.f32 %v589, %v653
    %v655 = vand.u32 %v87, 4294901760
    %656 = vmatmul.f32.gmra.mxu0 %v655
    %v657 = vpop.f32.mrf.mxu0
    %v658 = vadd.f32 %v593, %v657
    %v659 = vand.u32 %v88, 4294901760
    %660 = vmatmul.f32.gmra.mxu0 %v659
    %v661 = vpop.f32.mrf.mxu0
    %v662 = vadd.f32 %v597, %v661
    %v663 = vand.u32 %v89, 4294901760
    %664 = vmatmul.f32.gmra.mxu0 %v663
    %v665 = vpop.f32.mrf.mxu0
    %v666 = vadd.f32 %v601, %v665
    %667 = vdwg.mxu0
    %v668 = vld [vmem:[#allocation8] sm:$0xff]
    %v669 = vld [vmem:[#allocation8 + $0x8] sm:$0xff]
    %v670 = vld [vmem:[#allocation8 + $0x10] sm:$0xff]
    %v671 = vld [vmem:[#allocation8 + $0x18] sm:$0xff]
    %v672 = vld [vmem:[#allocation8 + $0x20] sm:$0xff]
    %v673 = vld [vmem:[#allocation8 + $0x28] sm:$0xff]
    %v674 = vld [vmem:[#allocation8 + $0x30] sm:$0xff]
    %v675 = vld [vmem:[#allocation8 + $0x38] sm:$0xff]
    %v676 = vld [vmem:[#allocation8 + $0x40] sm:$0xff]
    %v677 = vld [vmem:[#allocation8 + $0x48] sm:$0xff]
    %v678 = vld [vmem:[#allocation8 + $0x50] sm:$0xff]
    %v679 = vld [vmem:[#allocation8 + $0x58] sm:$0xff]
    %v680 = vld [vmem:[#allocation8 + $0x60] sm:$0xff]
    %v681 = vld [vmem:[#allocation8 + $0x68] sm:$0xff]
    %v682 = vld [vmem:[#allocation8 + $0x70] sm:$0xff]
    %v683 = vld [vmem:[#allocation8 + $0x78] sm:$0xff]
    %v684 = vld [vmem:[#allocation8 + $0x80] sm:$0xff]
    %v685 = vld [vmem:[#allocation8 + $0x88] sm:$0xff]
    %v686 = vld [vmem:[#allocation8 + $0x90] sm:$0xff]
    %v687 = vld [vmem:[#allocation8 + $0x98] sm:$0xff]
    %v688 = vld [vmem:[#allocation8 + $0xa0] sm:$0xff]
    %v689 = vld [vmem:[#allocation8 + $0xa8] sm:$0xff]
    %v690 = vld [vmem:[#allocation8 + $0xb0] sm:$0xff]
    %v691 = vld [vmem:[#allocation8 + $0xb8] sm:$0xff]
    %v692 = vld [vmem:[#allocation8 + $0xc0] sm:$0xff]
    %v693 = vld [vmem:[#allocation8 + $0xc8] sm:$0xff]
    %v694 = vld [vmem:[#allocation8 + $0xd0] sm:$0xff]
    %v695 = vld [vmem:[#allocation8 + $0xd8] sm:$0xff]
    %v696 = vld [vmem:[#allocation8 + $0xe0] sm:$0xff]
    %v697 = vld [vmem:[#allocation8 + $0xe8] sm:$0xff]
    %v698 = vld [vmem:[#allocation8 + $0xf0] sm:$0xff]
    %v699 = vld [vmem:[#allocation8 + $0xf8] sm:$0xff]
    %v700 = vld [vmem:[#allocation8 + $0x100] sm:$0xff]
    %v701 = vld [vmem:[#allocation8 + $0x108] sm:$0xff]
    %v702 = vld [vmem:[#allocation8 + $0x110] sm:$0xff]
    %v703 = vld [vmem:[#allocation8 + $0x118] sm:$0xff]
    %v704 = vld [vmem:[#allocation8 + $0x120] sm:$0xff]
    %v705 = vld [vmem:[#allocation8 + $0x128] sm:$0xff]
    %v706 = vld [vmem:[#allocation8 + $0x130] sm:$0xff]
    %v707 = vld [vmem:[#allocation8 + $0x138] sm:$0xff]
    %v708 = vld [vmem:[#allocation8 + $0x140] sm:$0xff]
    %v709 = vld [vmem:[#allocation8 + $0x148] sm:$0xff]
    %v710 = vld [vmem:[#allocation8 + $0x150] sm:$0xff]
    %v711 = vld [vmem:[#allocation8 + $0x158] sm:$0xff]
    %v712 = vld [vmem:[#allocation8 + $0x160] sm:$0xff]
    %v713 = vld [vmem:[#allocation8 + $0x168] sm:$0xff]
    %v714 = vld [vmem:[#allocation8 + $0x170] sm:$0xff]
    %v715 = vld [vmem:[#allocation8 + $0x178] sm:$0xff]
    %v716 = vld [vmem:[%s4] sm:$0x7]
    %v718 = vperm.slane %v716, 0
    %v719 = vperm.slane %v716, 1
    %v720 = vperm.slane %v716, 2
    %v724 = vand.u32 %v713, 4294901760
    %725 = vmatpush.msra.mxu0 %v724
    %v726 = vand.u32 %v710, 4294901760
    %727 = vmatpush.msra.mxu0 %v726
    %v728 = vand.u32 %v707, 4294901760
    %729 = vmatpush.msra.mxu0 %v728
    %v730 = vand.u32 %v704, 4294901760
    %731 = vmatpush.msra.mxu0 %v730
    %v732 = vand.u32 %v701, 4294901760
    %733 = vmatpush.msra.mxu0 %v732
    %v734 = vand.u32 %v698, 4294901760
    %735 = vmatpush.msra.mxu0 %v734
    %v736 = vand.u32 %v695, 4294901760
    %737 = vmatpush.msra.mxu0 %v736
    %v738 = vand.u32 %v692, 4294901760
    %739 = vmatpush.msra.mxu0 %v738
    %v740 = vand.u32 %v689, 4294901760
    %741 = vmatpush.msra.mxu0 %v740
    %v742 = vand.u32 %v686, 4294901760
    %743 = vmatpush.msra.mxu0 %v742
    %v744 = vand.u32 %v683, 4294901760
    %745 = vmatpush.msra.mxu0 %v744
    %v746 = vand.u32 %v680, 4294901760
    %747 = vmatpush.msra.mxu0 %v746
    %v748 = vand.u32 %v677, 4294901760
    %749 = vmatpush.msra.mxu0 %v748
    %v750 = vand.u32 %v674, 4294901760
    %751 = vmatpush.msra.mxu0 %v750
    %v752 = vand.u32 %v671, 4294901760
    %753 = vmatpush.msra.mxu0 %v752
    %v754 = vand.u32 %v668, 4294901760
    %755 = vmatpush.msra.mxu0 %v754
    %v756 = vand.u32 %v638, 4294901760
    %v757 = vsub.f32 %v638, %v756
    %v758 = vand.u32 %v757, 4294901760
    %v759 = vsub.f32 %v757, %v758
    %v760 = vand.u32 %v759, 4294901760
    %761 = vmatmul.f32.gmra.mxu0 %v760
    %v762 = vpop.f32.mrf.mxu0
    %v763 = vadd.f32 %v718, %v762
    %v764 = vand.u32 %v642, 4294901760
    %v765 = vsub.f32 %v642, %v764
    %v766 = vand.u32 %v765, 4294901760
    %v767 = vsub.f32 %v765, %v766
    %v768 = vand.u32 %v767, 4294901760
    %769 = vmatmul.f32.gmra.mxu0 %v768
    %v770 = vpop.f32.mrf.mxu0
    %v771 = vadd.f32 %v718, %v770
    %v772 = vand.u32 %v646, 4294901760
    %v773 = vsub.f32 %v646, %v772
    %v774 = vand.u32 %v773, 4294901760
    %v775 = vsub.f32 %v773, %v774
    %v776 = vand.u32 %v775, 4294901760
    %777 = vmatmul.f32.gmra.mxu0 %v776
    %v778 = vpop.f32.mrf.mxu0
    %v779 = vadd.f32 %v718, %v778
    %v780 = vand.u32 %v650, 4294901760
    %v781 = vsub.f32 %v650, %v780
    %v782 = vand.u32 %v781, 4294901760
    %v783 = vsub.f32 %v781, %v782
    %v784 = vand.u32 %v783, 4294901760
    %785 = vmatmul.f32.gmra.mxu0 %v784
    %v786 = vpop.f32.mrf.mxu0
    %v787 = vadd.f32 %v718, %v786
    %v788 = vand.u32 %v654, 4294901760
    %v789 = vsub.f32 %v654, %v788
    %v790 = vand.u32 %v789, 4294901760
    %v791 = vsub.f32 %v789, %v790
    %v792 = vand.u32 %v791, 4294901760
    %793 = vmatmul.f32.gmra.mxu0 %v792
    %v794 = vpop.f32.mrf.mxu0
    %v795 = vadd.f32 %v718, %v794
    %v796 = vand.u32 %v658, 4294901760
    %v797 = vsub.f32 %v658, %v796
    %v798 = vand.u32 %v797, 4294901760
    %v799 = vsub.f32 %v797, %v798
    %v800 = vand.u32 %v799, 4294901760
    %801 = vmatmul.f32.gmra.mxu0 %v800
    %v802 = vpop.f32.mrf.mxu0
    %v803 = vadd.f32 %v718, %v802
    %v804 = vand.u32 %v662, 4294901760
    %v805 = vsub.f32 %v662, %v804
    %v806 = vand.u32 %v805, 4294901760
    %v807 = vsub.f32 %v805, %v806
    %v808 = vand.u32 %v807, 4294901760
    %809 = vmatmul.f32.gmra.mxu0 %v808
    %v810 = vpop.f32.mrf.mxu0
    %v811 = vadd.f32 %v718, %v810
    %v812 = vand.u32 %v666, 4294901760
    %v813 = vsub.f32 %v666, %v812
    %v814 = vand.u32 %v813, 4294901760
    %v815 = vsub.f32 %v813, %v814
    %v816 = vand.u32 %v815, 4294901760
    %817 = vmatmul.f32.gmra.mxu0 %v816
    %v818 = vpop.f32.mrf.mxu0
    %v819 = vadd.f32 %v718, %v818
    %820 = vdwg.mxu0
    %v821 = vand.u32 %v713, 4294901760
    %v822 = vsub.f32 %v713, %v821
    %v823 = vand.u32 %v822, 4294901760
    %v824 = vsub.f32 %v822, %v823
    %v825 = vand.u32 %v824, 4294901760
    %826 = vmatpush.msra.mxu0 %v825
    %v827 = vand.u32 %v710, 4294901760
    %v828 = vsub.f32 %v710, %v827
    %v829 = vand.u32 %v828, 4294901760
    %v830 = vsub.f32 %v828, %v829
    %v831 = vand.u32 %v830, 4294901760
    %832 = vmatpush.msra.mxu0 %v831
    %v833 = vand.u32 %v707, 4294901760
    %v834 = vsub.f32 %v707, %v833
    %v835 = vand.u32 %v834, 4294901760
    %v836 = vsub.f32 %v834, %v835
    %v837 = vand.u32 %v836, 4294901760
    %838 = vmatpush.msra.mxu0 %v837
    %v839 = vand.u32 %v704, 4294901760
    %v840 = vsub.f32 %v704, %v839
    %v841 = vand.u32 %v840, 4294901760
    %v842 = vsub.f32 %v840, %v841
    %v843 = vand.u32 %v842, 4294901760
    %844 = vmatpush.msra.mxu0 %v843
    %v845 = vand.u32 %v701, 4294901760
    %v846 = vsub.f32 %v701, %v845
    %v847 = vand.u32 %v846, 4294901760
    %v848 = vsub.f32 %v846, %v847
    %v849 = vand.u32 %v848, 4294901760
    %850 = vmatpush.msra.mxu0 %v849
    %v851 = vand.u32 %v698, 4294901760
    %v852 = vsub.f32 %v698, %v851
    %v853 = vand.u32 %v852, 4294901760
    %v854 = vsub.f32 %v852, %v853
    %v855 = vand.u32 %v854, 4294901760
    %856 = vmatpush.msra.mxu0 %v855
    %v857 = vand.u32 %v695, 4294901760
    %v858 = vsub.f32 %v695, %v857
    %v859 = vand.u32 %v858, 4294901760
    %v860 = vsub.f32 %v858, %v859
    %v861 = vand.u32 %v860, 4294901760
    %862 = vmatpush.msra.mxu0 %v861
    %v863 = vand.u32 %v692, 4294901760
    %v864 = vsub.f32 %v692, %v863
    %v865 = vand.u32 %v864, 4294901760
    %v866 = vsub.f32 %v864, %v865
    %v867 = vand.u32 %v866, 4294901760
    %868 = vmatpush.msra.mxu0 %v867
    %v869 = vand.u32 %v689, 4294901760
    %v870 = vsub.f32 %v689, %v869
    %v871 = vand.u32 %v870, 4294901760
    %v872 = vsub.f32 %v870, %v871
    %v873 = vand.u32 %v872, 4294901760
    %874 = vmatpush.msra.mxu0 %v873
    %v875 = vand.u32 %v686, 4294901760
    %v876 = vsub.f32 %v686, %v875
    %v877 = vand.u32 %v876, 4294901760
    %v878 = vsub.f32 %v876, %v877
    %v879 = vand.u32 %v878, 4294901760
    %880 = vmatpush.msra.mxu0 %v879
    %v881 = vand.u32 %v683, 4294901760
    %v882 = vsub.f32 %v683, %v881
    %v883 = vand.u32 %v882, 4294901760
    %v884 = vsub.f32 %v882, %v883
    %v885 = vand.u32 %v884, 4294901760
    %886 = vmatpush.msra.mxu0 %v885
    %v887 = vand.u32 %v680, 4294901760
    %v888 = vsub.f32 %v680, %v887
    %v889 = vand.u32 %v888, 4294901760
    %v890 = vsub.f32 %v888, %v889
    %v891 = vand.u32 %v890, 4294901760
    %892 = vmatpush.msra.mxu0 %v891
    %v893 = vand.u32 %v677, 4294901760
    %v894 = vsub.f32 %v677, %v893
    %v895 = vand.u32 %v894, 4294901760
    %v896 = vsub.f32 %v894, %v895
    %v897 = vand.u32 %v896, 4294901760
    %898 = vmatpush.msra.mxu0 %v897
    %v899 = vand.u32 %v674, 4294901760
    %v900 = vsub.f32 %v674, %v899
    %v901 = vand.u32 %v900, 4294901760
    %v902 = vsub.f32 %v900, %v901
    %v903 = vand.u32 %v902, 4294901760
    %904 = vmatpush.msra.mxu0 %v903
    %v905 = vand.u32 %v671, 4294901760
    %v906 = vsub.f32 %v671, %v905
    %v907 = vand.u32 %v906, 4294901760
    %v908 = vsub.f32 %v906, %v907
    %v909 = vand.u32 %v908, 4294901760
    %910 = vmatpush.msra.mxu0 %v909
    %v911 = vand.u32 %v668, 4294901760
    %v912 = vsub.f32 %v668, %v911
    %v913 = vand.u32 %v912, 4294901760
    %v914 = vsub.f32 %v912, %v913
    %v915 = vand.u32 %v914, 4294901760
    %916 = vmatpush.msra.mxu0 %v915
    %v917 = vand.u32 %v638, 4294901760
    %918 = vmatmul.f32.gmra.mxu0 %v917
    %v919 = vpop.f32.mrf.mxu0
    %v920 = vadd.f32 %v763, %v919
    %v921 = vand.u32 %v642, 4294901760
    %922 = vmatmul.f32.gmra.mxu0 %v921
    %v923 = vpop.f32.mrf.mxu0
    %v924 = vadd.f32 %v771, %v923
    %v925 = vand.u32 %v646, 4294901760
    %926 = vmatmul.f32.gmra.mxu0 %v925
    %v927 = vpop.f32.mrf.mxu0
    %v928 = vadd.f32 %v779, %v927
    %v929 = vand.u32 %v650, 4294901760
    %930 = vmatmul.f32.gmra.mxu0 %v929
    %v931 = vpop.f32.mrf.mxu0
    %v932 = vadd.f32 %v787, %v931
    %v933 = vand.u32 %v654, 4294901760
    %934 = vmatmul.f32.gmra.mxu0 %v933
    %v935 = vpop.f32.mrf.mxu0
    %v936 = vadd.f32 %v795, %v935
    %v937 = vand.u32 %v658, 4294901760
    %938 = vmatmul.f32.gmra.mxu0 %v937
    %v939 = vpop.f32.mrf.mxu0
    %v940 = vadd.f32 %v803, %v939
    %v941 = vand.u32 %v662, 4294901760
    %942 = vmatmul.f32.gmra.mxu0 %v941
    %v943 = vpop.f32.mrf.mxu0
    %v944 = vadd.f32 %v811, %v943
    %v945 = vand.u32 %v666, 4294901760
    %946 = vmatmul.f32.gmra.mxu0 %v945
    %v947 = vpop.f32.mrf.mxu0
    %v948 = vadd.f32 %v819, %v947
    %949 = vdwg.mxu0
    %v950 = vand.u32 %v713, 4294901760
    %v951 = vsub.f32 %v713, %v950
    %952 = vmatpush.msra.mxu0 %v951
    %v953 = vand.u32 %v710, 4294901760
    %v954 = vsub.f32 %v710, %v953
    %955 = vmatpush.msra.mxu0 %v954
    %v956 = vand.u32 %v707, 4294901760
    %v957 = vsub.f32 %v707, %v956
    %958 = vmatpush.msra.mxu0 %v957
    %v959 = vand.u32 %v704, 4294901760
    %v960 = vsub.f32 %v704, %v959
    %961 = vmatpush.msra.mxu0 %v960
    %v962 = vand.u32 %v701, 4294901760
    %v963 = vsub.f32 %v701, %v962
    %964 = vmatpush.msra.mxu0 %v963
    %v965 = vand.u32 %v698, 4294901760
    %v966 = vsub.f32 %v698, %v965
    %967 = vmatpush.msra.mxu0 %v966
    %v968 = vand.u32 %v695, 4294901760
    %v969 = vsub.f32 %v695, %v968
    %970 = vmatpush.msra.mxu0 %v969
    %v971 = vand.u32 %v692, 4294901760
    %v972 = vsub.f32 %v692, %v971
    %973 = vmatpush.msra.mxu0 %v972
    %v974 = vand.u32 %v689, 4294901760
    %v975 = vsub.f32 %v689, %v974
    %976 = vmatpush.msra.mxu0 %v975
    %v977 = vand.u32 %v686, 4294901760
    %v978 = vsub.f32 %v686, %v977
    %979 = vmatpush.msra.mxu0 %v978
    %v980 = vand.u32 %v683, 4294901760
    %v981 = vsub.f32 %v683, %v980
    %982 = vmatpush.msra.mxu0 %v981
    %v983 = vand.u32 %v680, 4294901760
    %v984 = vsub.f32 %v680, %v983
    %985 = vmatpush.msra.mxu0 %v984
    %v986 = vand.u32 %v677, 4294901760
    %v987 = vsub.f32 %v677, %v986
    %988 = vmatpush.msra.mxu0 %v987
    %v989 = vand.u32 %v674, 4294901760
    %v990 = vsub.f32 %v674, %v989
    %991 = vmatpush.msra.mxu0 %v990
    %v992 = vand.u32 %v671, 4294901760
    %v993 = vsub.f32 %v671, %v992
    %994 = vmatpush.msra.mxu0 %v993
    %v995 = vand.u32 %v668, 4294901760
    %v996 = vsub.f32 %v668, %v995
    %997 = vmatpush.msra.mxu0 %v996
    %v998 = vand.u32 %v638, 4294901760
    %v999 = vsub.f32 %v638, %v998
    %1000 = vmatmul.f32.gmra.mxu0 %v999
    %v1001 = vpop.f32.mrf.mxu0
    %v1002 = vadd.f32 %v920, %v1001
    %v1003 = vand.u32 %v642, 4294901760
    %v1004 = vsub.f32 %v642, %v1003
    %1005 = vmatmul.f32.gmra.mxu0 %v1004
    %v1006 = vpop.f32.mrf.mxu0
    %v1007 = vadd.f32 %v924, %v1006
    %v1008 = vand.u32 %v646, 4294901760
    %v1009 = vsub.f32 %v646, %v1008
    %1010 = vmatmul.f32.gmra.mxu0 %v1009
    %v1011 = vpop.f32.mrf.mxu0
    %v1012 = vadd.f32 %v928, %v1011
    %v1013 = vand.u32 %v650, 4294901760
    %v1014 = vsub.f32 %v650, %v1013
    %1015 = vmatmul.f32.gmra.mxu0 %v1014
    %v1016 = vpop.f32.mrf.mxu0
    %v1017 = vadd.f32 %v932, %v1016
    %v1018 = vand.u32 %v654, 4294901760
    %v1019 = vsub.f32 %v654, %v1018
    %1020 = vmatmul.f32.gmra.mxu0 %v1019
    %v1021 = vpop.f32.mrf.mxu0
    %v1022 = vadd.f32 %v936, %v1021
    %v1023 = vand.u32 %v658, 4294901760
    %v1024 = vsub.f32 %v658, %v1023
    %1025 = vmatmul.f32.gmra.mxu0 %v1024
    %v1026 = vpop.f32.mrf.mxu0
    %v1027 = vadd.f32 %v940, %v1026
    %v1028 = vand.u32 %v662, 4294901760
    %v1029 = vsub.f32 %v662, %v1028
    %1030 = vmatmul.f32.gmra.mxu0 %v1029
    %v1031 = vpop.f32.mrf.mxu0
    %v1032 = vadd.f32 %v944, %v1031
    %v1033 = vand.u32 %v666, 4294901760
    %v1034 = vsub.f32 %v666, %v1033
    %1035 = vmatmul.f32.gmra.mxu0 %v1034
    %v1036 = vpop.f32.mrf.mxu0
    %v1037 = vadd.f32 %v948, %v1036
    %1038 = vdwg.mxu0
    %v1039 = vand.u32 %v713, 4294901760
    %1040 = vmatpush.msra.mxu0 %v1039
    %v1041 = vand.u32 %v710, 4294901760
    %1042 = vmatpush.msra.mxu0 %v1041
    %v1043 = vand.u32 %v707, 4294901760
    %1044 = vmatpush.msra.mxu0 %v1043
    %v1045 = vand.u32 %v704, 4294901760
    %1046 = vmatpush.msra.mxu0 %v1045
    %v1047 = vand.u32 %v701, 4294901760
    %1048 = vmatpush.msra.mxu0 %v1047
    %v1049 = vand.u32 %v698, 4294901760
    %1050 = vmatpush.msra.mxu0 %v1049
    %v1051 = vand.u32 %v695, 4294901760
    %1052 = vmatpush.msra.mxu0 %v1051
    %v1053 = vand.u32 %v692, 4294901760
    %1054 = vmatpush.msra.mxu0 %v1053
    %v1055 = vand.u32 %v689, 4294901760
    %1056 = vmatpush.msra.mxu0 %v1055
    %v1057 = vand.u32 %v686, 4294901760
    %1058 = vmatpush.msra.mxu0 %v1057
    %v1059 = vand.u32 %v683, 4294901760
    %1060 = vmatpush.msra.mxu0 %v1059
    %v1061 = vand.u32 %v680, 4294901760
    %1062 = vmatpush.msra.mxu0 %v1061
    %v1063 = vand.u32 %v677, 4294901760
    %1064 = vmatpush.msra.mxu0 %v1063
    %v1065 = vand.u32 %v674, 4294901760
    %1066 = vmatpush.msra.mxu0 %v1065
    %v1067 = vand.u32 %v671, 4294901760
    %1068 = vmatpush.msra.mxu0 %v1067
    %v1069 = vand.u32 %v668, 4294901760
    %1070 = vmatpush.msra.mxu0 %v1069
    %v1071 = vand.u32 %v638, 4294901760
    %v1072 = vsub.f32 %v638, %v1071
    %v1073 = vand.u32 %v1072, 4294901760
    %1074 = vmatmul.f32.gmra.mxu0 %v1073
    %v1075 = vpop.f32.mrf.mxu0
    %v1076 = vadd.f32 %v1002, %v1075
    %v1077 = vand.u32 %v642, 4294901760
    %v1078 = vsub.f32 %v642, %v1077
    %v1079 = vand.u32 %v1078, 4294901760
    %1080 = vmatmul.f32.gmra.mxu0 %v1079
    %v1081 = vpop.f32.mrf.mxu0
    %v1082 = vadd.f32 %v1007, %v1081
    %v1083 = vand.u32 %v646, 4294901760
    %v1084 = vsub.f32 %v646, %v1083
    %v1085 = vand.u32 %v1084, 4294901760
    %1086 = vmatmul.f32.gmra.mxu0 %v1085
    %v1087 = vpop.f32.mrf.mxu0
    %v1088 = vadd.f32 %v1012, %v1087
    %v1089 = vand.u32 %v650, 4294901760
    %v1090 = vsub.f32 %v650, %v1089
    %v1091 = vand.u32 %v1090, 4294901760
    %1092 = vmatmul.f32.gmra.mxu0 %v1091
    %v1093 = vpop.f32.mrf.mxu0
    %v1094 = vadd.f32 %v1017, %v1093
    %v1095 = vand.u32 %v654, 4294901760
    %v1096 = vsub.f32 %v654, %v1095
    %v1097 = vand.u32 %v1096, 4294901760
    %1098 = vmatmul.f32.gmra.mxu0 %v1097
    %v1099 = vpop.f32.mrf.mxu0
    %v1100 = vadd.f32 %v1022, %v1099
    %v1101 = vand.u32 %v658, 4294901760
    %v1102 = vsub.f32 %v658, %v1101
    %v1103 = vand.u32 %v1102, 4294901760
    %1104 = vmatmul.f32.gmra.mxu0 %v1103
    %v1105 = vpop.f32.mrf.mxu0
    %v1106 = vadd.f32 %v1027, %v1105
    %v1107 = vand.u32 %v662, 4294901760
    %v1108 = vsub.f32 %v662, %v1107
    %v1109 = vand.u32 %v1108, 4294901760
    %1110 = vmatmul.f32.gmra.mxu0 %v1109
    %v1111 = vpop.f32.mrf.mxu0
    %v1112 = vadd.f32 %v1032, %v1111
    %v1113 = vand.u32 %v666, 4294901760
    %v1114 = vsub.f32 %v666, %v1113
    %v1115 = vand.u32 %v1114, 4294901760
    %1116 = vmatmul.f32.gmra.mxu0 %v1115
    %v1117 = vpop.f32.mrf.mxu0
    %v1118 = vadd.f32 %v1037, %v1117
    %1119 = vdwg.mxu0
    %v1120 = vand.u32 %v713, 4294901760
    %v1121 = vsub.f32 %v713, %v1120
    %v1122 = vand.u32 %v1121, 4294901760
    %1123 = vmatpush.msra.mxu0 %v1122
    %v1124 = vand.u32 %v710, 4294901760
    %v1125 = vsub.f32 %v710, %v1124
    %v1126 = vand.u32 %v1125, 4294901760
    %1127 = vmatpush.msra.mxu0 %v1126
    %v1128 = vand.u32 %v707, 4294901760
    %v1129 = vsub.f32 %v707, %v1128
    %v1130 = vand.u32 %v1129, 4294901760
    %1131 = vmatpush.msra.mxu0 %v1130
    %v1132 = vand.u32 %v704, 4294901760
    %v1133 = vsub.f32 %v704, %v1132
    %v1134 = vand.u32 %v1133, 4294901760
    %1135 = vmatpush.msra.mxu0 %v1134
    %v1136 = vand.u32 %v701, 4294901760
    %v1137 = vsub.f32 %v701, %v1136
    %v1138 = vand.u32 %v1137, 4294901760
    %1139 = vmatpush.msra.mxu0 %v1138
    %v1140 = vand.u32 %v698, 4294901760
    %v1141 = vsub.f32 %v698, %v1140
    %v1142 = vand.u32 %v1141, 4294901760
    %1143 = vmatpush.msra.mxu0 %v1142
    %v1144 = vand.u32 %v695, 4294901760
    %v1145 = vsub.f32 %v695, %v1144
    %v1146 = vand.u32 %v1145, 4294901760
    %1147 = vmatpush.msra.mxu0 %v1146
    %v1148 = vand.u32 %v692, 4294901760
    %v1149 = vsub.f32 %v692, %v1148
    %v1150 = vand.u32 %v1149, 4294901760
    %1151 = vmatpush.msra.mxu0 %v1150
    %v1152 = vand.u32 %v689, 4294901760
    %v1153 = vsub.f32 %v689, %v1152
    %v1154 = vand.u32 %v1153, 4294901760
    %1155 = vmatpush.msra.mxu0 %v1154
    %v1156 = vand.u32 %v686, 4294901760
    %v1157 = vsub.f32 %v686, %v1156
    %v1158 = vand.u32 %v1157, 4294901760
    %1159 = vmatpush.msra.mxu0 %v1158
    %v1160 = vand.u32 %v683, 4294901760
    %v1161 = vsub.f32 %v683, %v1160
    %v1162 = vand.u32 %v1161, 4294901760
    %1163 = vmatpush.msra.mxu0 %v1162
    %v1164 = vand.u32 %v680, 4294901760
    %v1165 = vsub.f32 %v680, %v1164
    %v1166 = vand.u32 %v1165, 4294901760
    %1167 = vmatpush.msra.mxu0 %v1166
    %v1168 = vand.u32 %v677, 4294901760
    %v1169 = vsub.f32 %v677, %v1168
    %v1170 = vand.u32 %v1169, 4294901760
    %1171 = vmatpush.msra.mxu0 %v1170
    %v1172 = vand.u32 %v674, 4294901760
    %v1173 = vsub.f32 %v674, %v1172
    %v1174 = vand.u32 %v1173, 4294901760
    %1175 = vmatpush.msra.mxu0 %v1174
    %v1176 = vand.u32 %v671, 4294901760
    %v1177 = vsub.f32 %v671, %v1176
    %v1178 = vand.u32 %v1177, 4294901760
    %1179 = vmatpush.msra.mxu0 %v1178
    %v1180 = vand.u32 %v668, 4294901760
    %v1181 = vsub.f32 %v668, %v1180
    %v1182 = vand.u32 %v1181, 4294901760
    %1183 = vmatpush.msra.mxu0 %v1182
    %v1184 = vand.u32 %v638, 4294901760
    %1185 = vmatmul.f32.gmra.mxu0 %v1184
    %v1186 = vpop.f32.mrf.mxu0
    %v1187 = vadd.f32 %v1076, %v1186
    %v1188 = vand.u32 %v642, 4294901760
    %1189 = vmatmul.f32.gmra.mxu0 %v1188
    %v1190 = vpop.f32.mrf.mxu0
    %v1191 = vadd.f32 %v1082, %v1190
    %v1192 = vand.u32 %v646, 4294901760
    %1193 = vmatmul.f32.gmra.mxu0 %v1192
    %v1194 = vpop.f32.mrf.mxu0
    %v1195 = vadd.f32 %v1088, %v1194
    %v1196 = vand.u32 %v650, 4294901760
    %1197 = vmatmul.f32.gmra.mxu0 %v1196
    %v1198 = vpop.f32.mrf.mxu0
    %v1199 = vadd.f32 %v1094, %v1198
    %v1200 = vand.u32 %v654, 4294901760
    %1201 = vmatmul.f32.gmra.mxu0 %v1200
    %v1202 = vpop.f32.mrf.mxu0
    %v1203 = vadd.f32 %v1100, %v1202
    %v1204 = vand.u32 %v658, 4294901760
    %1205 = vmatmul.f32.gmra.mxu0 %v1204
    %v1206 = vpop.f32.mrf.mxu0
    %v1207 = vadd.f32 %v1106, %v1206
    %v1208 = vand.u32 %v662, 4294901760
    %1209 = vmatmul.f32.gmra.mxu0 %v1208
    %v1210 = vpop.f32.mrf.mxu0
    %v1211 = vadd.f32 %v1112, %v1210
    %v1212 = vand.u32 %v666, 4294901760
    %1213 = vmatmul.f32.gmra.mxu0 %v1212
    %v1214 = vpop.f32.mrf.mxu0
    %v1215 = vadd.f32 %v1118, %v1214
    %1216 = vdwg.mxu0
    %v1217 = vand.u32 %v713, 4294901760
    %1218 = vmatpush.msra.mxu0 %v1217
    %v1219 = vand.u32 %v710, 4294901760
    %1220 = vmatpush.msra.mxu0 %v1219
    %v1221 = vand.u32 %v707, 4294901760
    %1222 = vmatpush.msra.mxu0 %v1221
    %v1223 = vand.u32 %v704, 4294901760
    %1224 = vmatpush.msra.mxu0 %v1223
    %v1225 = vand.u32 %v701, 4294901760
    %1226 = vmatpush.msra.mxu0 %v1225
    %v1227 = vand.u32 %v698, 4294901760
    %1228 = vmatpush.msra.mxu0 %v1227
    %v1229 = vand.u32 %v695, 4294901760
    %1230 = vmatpush.msra.mxu0 %v1229
    %v1231 = vand.u32 %v692, 4294901760
    %1232 = vmatpush.msra.mxu0 %v1231
    %v1233 = vand.u32 %v689, 4294901760
    %1234 = vmatpush.msra.mxu0 %v1233
    %v1235 = vand.u32 %v686, 4294901760
    %1236 = vmatpush.msra.mxu0 %v1235
    %v1237 = vand.u32 %v683, 4294901760
    %1238 = vmatpush.msra.mxu0 %v1237
    %v1239 = vand.u32 %v680, 4294901760
    %1240 = vmatpush.msra.mxu0 %v1239
    %v1241 = vand.u32 %v677, 4294901760
    %1242 = vmatpush.msra.mxu0 %v1241
    %v1243 = vand.u32 %v674, 4294901760
    %1244 = vmatpush.msra.mxu0 %v1243
    %v1245 = vand.u32 %v671, 4294901760
    %1246 = vmatpush.msra.mxu0 %v1245
    %v1247 = vand.u32 %v668, 4294901760
    %1248 = vmatpush.msra.mxu0 %v1247
    %v1249 = vand.u32 %v638, 4294901760
    %1250 = vmatmul.f32.gmra.mxu0 %v1249
    %v1251 = vpop.f32.mrf.mxu0
    %v1252 = vadd.f32 %v1187, %v1251
    %v1253 = vand.u32 %v642, 4294901760
    %1254 = vmatmul.f32.gmra.mxu0 %v1253
    %v1255 = vpop.f32.mrf.mxu0
    %v1256 = vadd.f32 %v1191, %v1255
    %v1257 = vand.u32 %v646, 4294901760
    %1258 = vmatmul.f32.gmra.mxu0 %v1257
    %v1259 = vpop.f32.mrf.mxu0
    %v1260 = vadd.f32 %v1195, %v1259
    %v1261 = vand.u32 %v650, 4294901760
    %1262 = vmatmul.f32.gmra.mxu0 %v1261
    %v1263 = vpop.f32.mrf.mxu0
    %v1264 = vadd.f32 %v1199, %v1263
    %v1265 = vand.u32 %v654, 4294901760
    %1266 = vmatmul.f32.gmra.mxu0 %v1265
    %v1267 = vpop.f32.mrf.mxu0
    %v1268 = vadd.f32 %v1203, %v1267
    %v1269 = vand.u32 %v658, 4294901760
    %1270 = vmatmul.f32.gmra.mxu0 %v1269
    %v1271 = vpop.f32.mrf.mxu0
    %v1272 = vadd.f32 %v1207, %v1271
    %v1273 = vand.u32 %v662, 4294901760
    %1274 = vmatmul.f32.gmra.mxu0 %v1273
    %v1275 = vpop.f32.mrf.mxu0
    %v1276 = vadd.f32 %v1211, %v1275
    %v1277 = vand.u32 %v666, 4294901760
    %1278 = vmatmul.f32.gmra.mxu0 %v1277
    %v1279 = vpop.f32.mrf.mxu0
    %v1280 = vadd.f32 %v1215, %v1279
    %1281 = vdwg.mxu0
    %v1282 = vand.u32 %v714, 4294901760
    %1283 = vmatpush.msra.mxu0 %v1282
    %v1284 = vand.u32 %v711, 4294901760
    %1285 = vmatpush.msra.mxu0 %v1284
    %v1286 = vand.u32 %v708, 4294901760
    %1287 = vmatpush.msra.mxu0 %v1286
    %v1288 = vand.u32 %v705, 4294901760
    %1289 = vmatpush.msra.mxu0 %v1288
    %v1290 = vand.u32 %v702, 4294901760
    %1291 = vmatpush.msra.mxu0 %v1290
    %v1292 = vand.u32 %v699, 4294901760
    %1293 = vmatpush.msra.mxu0 %v1292
    %v1294 = vand.u32 %v696, 4294901760
    %1295 = vmatpush.msra.mxu0 %v1294
    %v1296 = vand.u32 %v693, 4294901760
    %1297 = vmatpush.msra.mxu0 %v1296
    %v1298 = vand.u32 %v690, 4294901760
    %1299 = vmatpush.msra.mxu0 %v1298
    %v1300 = vand.u32 %v687, 4294901760
    %1301 = vmatpush.msra.mxu0 %v1300
    %v1302 = vand.u32 %v684, 4294901760
    %1303 = vmatpush.msra.mxu0 %v1302
    %v1304 = vand.u32 %v681, 4294901760
    %1305 = vmatpush.msra.mxu0 %v1304
    %v1306 = vand.u32 %v678, 4294901760
    %1307 = vmatpush.msra.mxu0 %v1306
    %v1308 = vand.u32 %v675, 4294901760
    %1309 = vmatpush.msra.mxu0 %v1308
    %v1310 = vand.u32 %v672, 4294901760
    %1311 = vmatpush.msra.mxu0 %v1310
    %v1312 = vand.u32 %v669, 4294901760
    %1313 = vmatpush.msra.mxu0 %v1312
    %v1314 = vand.u32 %v638, 4294901760
    %v1315 = vsub.f32 %v638, %v1314
    %v1316 = vand.u32 %v1315, 4294901760
    %v1317 = vsub.f32 %v1315, %v1316
    %v1318 = vand.u32 %v1317, 4294901760
    %1319 = vmatmul.f32.gmra.mxu0 %v1318
    %v1320 = vpop.f32.mrf.mxu0
    %v1321 = vadd.f32 %v719, %v1320
    %v1322 = vand.u32 %v642, 4294901760
    %v1323 = vsub.f32 %v642, %v1322
    %v1324 = vand.u32 %v1323, 4294901760
    %v1325 = vsub.f32 %v1323, %v1324
    %v1326 = vand.u32 %v1325, 4294901760
    %1327 = vmatmul.f32.gmra.mxu0 %v1326
    %v1328 = vpop.f32.mrf.mxu0
    %v1329 = vadd.f32 %v719, %v1328
    %v1330 = vand.u32 %v646, 4294901760
    %v1331 = vsub.f32 %v646, %v1330
    %v1332 = vand.u32 %v1331, 4294901760
    %v1333 = vsub.f32 %v1331, %v1332
    %v1334 = vand.u32 %v1333, 4294901760
    %1335 = vmatmul.f32.gmra.mxu0 %v1334
    %v1336 = vpop.f32.mrf.mxu0
    %v1337 = vadd.f32 %v719, %v1336
    %v1338 = vand.u32 %v650, 4294901760
    %v1339 = vsub.f32 %v650, %v1338
    %v1340 = vand.u32 %v1339, 4294901760
    %v1341 = vsub.f32 %v1339, %v1340
    %v1342 = vand.u32 %v1341, 4294901760
    %1343 = vmatmul.f32.gmra.mxu0 %v1342
    %v1344 = vpop.f32.mrf.mxu0
    %v1345 = vadd.f32 %v719, %v1344
    %v1346 = vand.u32 %v654, 4294901760
    %v1347 = vsub.f32 %v654, %v1346
    %v1348 = vand.u32 %v1347, 4294901760
    %v1349 = vsub.f32 %v1347, %v1348
    %v1350 = vand.u32 %v1349, 4294901760
    %1351 = vmatmul.f32.gmra.mxu0 %v1350
    %v1352 = vpop.f32.mrf.mxu0
    %v1353 = vadd.f32 %v719, %v1352
    %v1354 = vand.u32 %v658, 4294901760
    %v1355 = vsub.f32 %v658, %v1354
    %v1356 = vand.u32 %v1355, 4294901760
    %v1357 = vsub.f32 %v1355, %v1356
    %v1358 = vand.u32 %v1357, 4294901760
    %1359 = vmatmul.f32.gmra.mxu0 %v1358
    %v1360 = vpop.f32.mrf.mxu0
    %v1361 = vadd.f32 %v719, %v1360
    %v1362 = vand.u32 %v662, 4294901760
    %v1363 = vsub.f32 %v662, %v1362
    %v1364 = vand.u32 %v1363, 4294901760
    %v1365 = vsub.f32 %v1363, %v1364
    %v1366 = vand.u32 %v1365, 4294901760
    %1367 = vmatmul.f32.gmra.mxu0 %v1366
    %v1368 = vpop.f32.mrf.mxu0
    %v1369 = vadd.f32 %v719, %v1368
    %v1370 = vand.u32 %v666, 4294901760
    %v1371 = vsub.f32 %v666, %v1370
    %v1372 = vand.u32 %v1371, 4294901760
    %v1373 = vsub.f32 %v1371, %v1372
    %v1374 = vand.u32 %v1373, 4294901760
    %1375 = vmatmul.f32.gmra.mxu0 %v1374
    %v1376 = vpop.f32.mrf.mxu0
    %v1377 = vadd.f32 %v719, %v1376
    %1378 = vdwg.mxu0
    %v1379 = vand.u32 %v714, 4294901760
    %v1380 = vsub.f32 %v714, %v1379
    %v1381 = vand.u32 %v1380, 4294901760
    %v1382 = vsub.f32 %v1380, %v1381
    %v1383 = vand.u32 %v1382, 4294901760
    %1384 = vmatpush.msra.mxu0 %v1383
    %v1385 = vand.u32 %v711, 4294901760
    %v1386 = vsub.f32 %v711, %v1385
    %v1387 = vand.u32 %v1386, 4294901760
    %v1388 = vsub.f32 %v1386, %v1387
    %v1389 = vand.u32 %v1388, 4294901760
    %1390 = vmatpush.msra.mxu0 %v1389
    %v1391 = vand.u32 %v708, 4294901760
    %v1392 = vsub.f32 %v708, %v1391
    %v1393 = vand.u32 %v1392, 4294901760
    %v1394 = vsub.f32 %v1392, %v1393
    %v1395 = vand.u32 %v1394, 4294901760
    %1396 = vmatpush.msra.mxu0 %v1395
    %v1397 = vand.u32 %v705, 4294901760
    %v1398 = vsub.f32 %v705, %v1397
    %v1399 = vand.u32 %v1398, 4294901760
    %v1400 = vsub.f32 %v1398, %v1399
    %v1401 = vand.u32 %v1400, 4294901760
    %1402 = vmatpush.msra.mxu0 %v1401
    %v1403 = vand.u32 %v702, 4294901760
    %v1404 = vsub.f32 %v702, %v1403
    %v1405 = vand.u32 %v1404, 4294901760
    %v1406 = vsub.f32 %v1404, %v1405
    %v1407 = vand.u32 %v1406, 4294901760
    %1408 = vmatpush.msra.mxu0 %v1407
    %v1409 = vand.u32 %v699, 4294901760
    %v1410 = vsub.f32 %v699, %v1409
    %v1411 = vand.u32 %v1410, 4294901760
    %v1412 = vsub.f32 %v1410, %v1411
    %v1413 = vand.u32 %v1412, 4294901760
    %1414 = vmatpush.msra.mxu0 %v1413
    %v1415 = vand.u32 %v696, 4294901760
    %v1416 = vsub.f32 %v696, %v1415
    %v1417 = vand.u32 %v1416, 4294901760
    %v1418 = vsub.f32 %v1416, %v1417
    %v1419 = vand.u32 %v1418, 4294901760
    %1420 = vmatpush.msra.mxu0 %v1419
    %v1421 = vand.u32 %v693, 4294901760
    %v1422 = vsub.f32 %v693, %v1421
    %v1423 = vand.u32 %v1422, 4294901760
    %v1424 = vsub.f32 %v1422, %v1423
    %v1425 = vand.u32 %v1424, 4294901760
    %1426 = vmatpush.msra.mxu0 %v1425
    %v1427 = vand.u32 %v690, 4294901760
    %v1428 = vsub.f32 %v690, %v1427
    %v1429 = vand.u32 %v1428, 4294901760
    %v1430 = vsub.f32 %v1428, %v1429
    %v1431 = vand.u32 %v1430, 4294901760
    %1432 = vmatpush.msra.mxu0 %v1431
    %v1433 = vand.u32 %v687, 4294901760
    %v1434 = vsub.f32 %v687, %v1433
    %v1435 = vand.u32 %v1434, 4294901760
    %v1436 = vsub.f32 %v1434, %v1435
    %v1437 = vand.u32 %v1436, 4294901760
    %1438 = vmatpush.msra.mxu0 %v1437
    %v1439 = vand.u32 %v684, 4294901760
    %v1440 = vsub.f32 %v684, %v1439
    %v1441 = vand.u32 %v1440, 4294901760
    %v1442 = vsub.f32 %v1440, %v1441
    %v1443 = vand.u32 %v1442, 4294901760
    %1444 = vmatpush.msra.mxu0 %v1443
    %v1445 = vand.u32 %v681, 4294901760
    %v1446 = vsub.f32 %v681, %v1445
    %v1447 = vand.u32 %v1446, 4294901760
    %v1448 = vsub.f32 %v1446, %v1447
    %v1449 = vand.u32 %v1448, 4294901760
    %1450 = vmatpush.msra.mxu0 %v1449
    %v1451 = vand.u32 %v678, 4294901760
    %v1452 = vsub.f32 %v678, %v1451
    %v1453 = vand.u32 %v1452, 4294901760
    %v1454 = vsub.f32 %v1452, %v1453
    %v1455 = vand.u32 %v1454, 4294901760
    %1456 = vmatpush.msra.mxu0 %v1455
    %v1457 = vand.u32 %v675, 4294901760
    %v1458 = vsub.f32 %v675, %v1457
    %v1459 = vand.u32 %v1458, 4294901760
    %v1460 = vsub.f32 %v1458, %v1459
    %v1461 = vand.u32 %v1460, 4294901760
    %1462 = vmatpush.msra.mxu0 %v1461
    %v1463 = vand.u32 %v672, 4294901760
    %v1464 = vsub.f32 %v672, %v1463
    %v1465 = vand.u32 %v1464, 4294901760
    %v1466 = vsub.f32 %v1464, %v1465
    %v1467 = vand.u32 %v1466, 4294901760
    %1468 = vmatpush.msra.mxu0 %v1467
    %v1469 = vand.u32 %v669, 4294901760
    %v1470 = vsub.f32 %v669, %v1469
    %v1471 = vand.u32 %v1470, 4294901760
    %v1472 = vsub.f32 %v1470, %v1471
    %v1473 = vand.u32 %v1472, 4294901760
    %1474 = vmatpush.msra.mxu0 %v1473
    %v1475 = vand.u32 %v638, 4294901760
    %1476 = vmatmul.f32.gmra.mxu0 %v1475
    %v1477 = vpop.f32.mrf.mxu0
    %v1478 = vadd.f32 %v1321, %v1477
    %v1479 = vand.u32 %v642, 4294901760
    %1480 = vmatmul.f32.gmra.mxu0 %v1479
    %v1481 = vpop.f32.mrf.mxu0
    %v1482 = vadd.f32 %v1329, %v1481
    %v1483 = vand.u32 %v646, 4294901760
    %1484 = vmatmul.f32.gmra.mxu0 %v1483
    %v1485 = vpop.f32.mrf.mxu0
    %v1486 = vadd.f32 %v1337, %v1485
    %v1487 = vand.u32 %v650, 4294901760
    %1488 = vmatmul.f32.gmra.mxu0 %v1487
    %v1489 = vpop.f32.mrf.mxu0
    %v1490 = vadd.f32 %v1345, %v1489
    %v1491 = vand.u32 %v654, 4294901760
    %1492 = vmatmul.f32.gmra.mxu0 %v1491
    %v1493 = vpop.f32.mrf.mxu0
    %v1494 = vadd.f32 %v1353, %v1493
    %v1495 = vand.u32 %v658, 4294901760
    %1496 = vmatmul.f32.gmra.mxu0 %v1495
    %v1497 = vpop.f32.mrf.mxu0
    %v1498 = vadd.f32 %v1361, %v1497
    %v1499 = vand.u32 %v662, 4294901760
    %1500 = vmatmul.f32.gmra.mxu0 %v1499
    %v1501 = vpop.f32.mrf.mxu0
    %v1502 = vadd.f32 %v1369, %v1501
    %v1503 = vand.u32 %v666, 4294901760
    %1504 = vmatmul.f32.gmra.mxu0 %v1503
    %v1505 = vpop.f32.mrf.mxu0
    %v1506 = vadd.f32 %v1377, %v1505
    %1507 = vdwg.mxu0
    %v1508 = vand.u32 %v714, 4294901760
    %v1509 = vsub.f32 %v714, %v1508
    %1510 = vmatpush.msra.mxu0 %v1509
    %v1511 = vand.u32 %v711, 4294901760
    %v1512 = vsub.f32 %v711, %v1511
    %1513 = vmatpush.msra.mxu0 %v1512
    %v1514 = vand.u32 %v708, 4294901760
    %v1515 = vsub.f32 %v708, %v1514
    %1516 = vmatpush.msra.mxu0 %v1515
    %v1517 = vand.u32 %v705, 4294901760
    %v1518 = vsub.f32 %v705, %v1517
    %1519 = vmatpush.msra.mxu0 %v1518
    %v1520 = vand.u32 %v702, 4294901760
    %v1521 = vsub.f32 %v702, %v1520
    %1522 = vmatpush.msra.mxu0 %v1521
    %v1523 = vand.u32 %v699, 4294901760
    %v1524 = vsub.f32 %v699, %v1523
    %1525 = vmatpush.msra.mxu0 %v1524
    %v1526 = vand.u32 %v696, 4294901760
    %v1527 = vsub.f32 %v696, %v1526
    %1528 = vmatpush.msra.mxu0 %v1527
    %v1529 = vand.u32 %v693, 4294901760
    %v1530 = vsub.f32 %v693, %v1529
    %1531 = vmatpush.msra.mxu0 %v1530
    %v1532 = vand.u32 %v690, 4294901760
    %v1533 = vsub.f32 %v690, %v1532
    %1534 = vmatpush.msra.mxu0 %v1533
    %v1535 = vand.u32 %v687, 4294901760
    %v1536 = vsub.f32 %v687, %v1535
    %1537 = vmatpush.msra.mxu0 %v1536
    %v1538 = vand.u32 %v684, 4294901760
    %v1539 = vsub.f32 %v684, %v1538
    %1540 = vmatpush.msra.mxu0 %v1539
    %v1541 = vand.u32 %v681, 4294901760
    %v1542 = vsub.f32 %v681, %v1541
    %1543 = vmatpush.msra.mxu0 %v1542
    %v1544 = vand.u32 %v678, 4294901760
    %v1545 = vsub.f32 %v678, %v1544
    %1546 = vmatpush.msra.mxu0 %v1545
    %v1547 = vand.u32 %v675, 4294901760
    %v1548 = vsub.f32 %v675, %v1547
    %1549 = vmatpush.msra.mxu0 %v1548
    %v1550 = vand.u32 %v672, 4294901760
    %v1551 = vsub.f32 %v672, %v1550
    %1552 = vmatpush.msra.mxu0 %v1551
    %v1553 = vand.u32 %v669, 4294901760
    %v1554 = vsub.f32 %v669, %v1553
    %1555 = vmatpush.msra.mxu0 %v1554
    %v1556 = vand.u32 %v638, 4294901760
    %v1557 = vsub.f32 %v638, %v1556
    %1558 = vmatmul.f32.gmra.mxu0 %v1557
    %v1559 = vpop.f32.mrf.mxu0
    %v1560 = vadd.f32 %v1478, %v1559
    %v1561 = vand.u32 %v642, 4294901760
    %v1562 = vsub.f32 %v642, %v1561
    %1563 = vmatmul.f32.gmra.mxu0 %v1562
    %v1564 = vpop.f32.mrf.mxu0
    %v1565 = vadd.f32 %v1482, %v1564
    %v1566 = vand.u32 %v646, 4294901760
    %v1567 = vsub.f32 %v646, %v1566
    %1568 = vmatmul.f32.gmra.mxu0 %v1567
    %v1569 = vpop.f32.mrf.mxu0
    %v1570 = vadd.f32 %v1486, %v1569
    %v1571 = vand.u32 %v650, 4294901760
    %v1572 = vsub.f32 %v650, %v1571
    %1573 = vmatmul.f32.gmra.mxu0 %v1572
    %v1574 = vpop.f32.mrf.mxu0
    %v1575 = vadd.f32 %v1490, %v1574
    %v1576 = vand.u32 %v654, 4294901760
    %v1577 = vsub.f32 %v654, %v1576
    %1578 = vmatmul.f32.gmra.mxu0 %v1577
    %v1579 = vpop.f32.mrf.mxu0
    %v1580 = vadd.f32 %v1494, %v1579
    %v1581 = vand.u32 %v658, 4294901760
    %v1582 = vsub.f32 %v658, %v1581
    %1583 = vmatmul.f32.gmra.mxu0 %v1582
    %v1584 = vpop.f32.mrf.mxu0
    %v1585 = vadd.f32 %v1498, %v1584
    %v1586 = vand.u32 %v662, 4294901760
    %v1587 = vsub.f32 %v662, %v1586
    %1588 = vmatmul.f32.gmra.mxu0 %v1587
    %v1589 = vpop.f32.mrf.mxu0
    %v1590 = vadd.f32 %v1502, %v1589
    %v1591 = vand.u32 %v666, 4294901760
    %v1592 = vsub.f32 %v666, %v1591
    %1593 = vmatmul.f32.gmra.mxu0 %v1592
    %v1594 = vpop.f32.mrf.mxu0
    %v1595 = vadd.f32 %v1506, %v1594
    %1596 = vdwg.mxu0
    %v1597 = vand.u32 %v714, 4294901760
    %1598 = vmatpush.msra.mxu0 %v1597
    %v1599 = vand.u32 %v711, 4294901760
    %1600 = vmatpush.msra.mxu0 %v1599
    %v1601 = vand.u32 %v708, 4294901760
    %1602 = vmatpush.msra.mxu0 %v1601
    %v1603 = vand.u32 %v705, 4294901760
    %1604 = vmatpush.msra.mxu0 %v1603
    %v1605 = vand.u32 %v702, 4294901760
    %1606 = vmatpush.msra.mxu0 %v1605
    %v1607 = vand.u32 %v699, 4294901760
    %1608 = vmatpush.msra.mxu0 %v1607
    %v1609 = vand.u32 %v696, 4294901760
    %1610 = vmatpush.msra.mxu0 %v1609
    %v1611 = vand.u32 %v693, 4294901760
    %1612 = vmatpush.msra.mxu0 %v1611
    %v1613 = vand.u32 %v690, 4294901760
    %1614 = vmatpush.msra.mxu0 %v1613
    %v1615 = vand.u32 %v687, 4294901760
    %1616 = vmatpush.msra.mxu0 %v1615
    %v1617 = vand.u32 %v684, 4294901760
    %1618 = vmatpush.msra.mxu0 %v1617
    %v1619 = vand.u32 %v681, 4294901760
    %1620 = vmatpush.msra.mxu0 %v1619
    %v1621 = vand.u32 %v678, 4294901760
    %1622 = vmatpush.msra.mxu0 %v1621
    %v1623 = vand.u32 %v675, 4294901760
    %1624 = vmatpush.msra.mxu0 %v1623
    %v1625 = vand.u32 %v672, 4294901760
    %1626 = vmatpush.msra.mxu0 %v1625
    %v1627 = vand.u32 %v669, 4294901760
    %1628 = vmatpush.msra.mxu0 %v1627
    %v1629 = vand.u32 %v638, 4294901760
    %v1630 = vsub.f32 %v638, %v1629
    %v1631 = vand.u32 %v1630, 4294901760
    %1632 = vmatmul.f32.gmra.mxu0 %v1631
    %v1633 = vpop.f32.mrf.mxu0
    %v1634 = vadd.f32 %v1560, %v1633
    %v1635 = vand.u32 %v642, 4294901760
    %v1636 = vsub.f32 %v642, %v1635
    %v1637 = vand.u32 %v1636, 4294901760
    %1638 = vmatmul.f32.gmra.mxu0 %v1637
    %v1639 = vpop.f32.mrf.mxu0
    %v1640 = vadd.f32 %v1565, %v1639
    %v1641 = vand.u32 %v646, 4294901760
    %v1642 = vsub.f32 %v646, %v1641
    %v1643 = vand.u32 %v1642, 4294901760
    %1644 = vmatmul.f32.gmra.mxu0 %v1643
    %v1645 = vpop.f32.mrf.mxu0
    %v1646 = vadd.f32 %v1570, %v1645
    %v1647 = vand.u32 %v650, 4294901760
    %v1648 = vsub.f32 %v650, %v1647
    %v1649 = vand.u32 %v1648, 4294901760
    %1650 = vmatmul.f32.gmra.mxu0 %v1649
    %v1651 = vpop.f32.mrf.mxu0
    %v1652 = vadd.f32 %v1575, %v1651
    %v1653 = vand.u32 %v654, 4294901760
    %v1654 = vsub.f32 %v654, %v1653
    %v1655 = vand.u32 %v1654, 4294901760
    %1656 = vmatmul.f32.gmra.mxu0 %v1655
    %v1657 = vpop.f32.mrf.mxu0
    %v1658 = vadd.f32 %v1580, %v1657
    %v1659 = vand.u32 %v658, 4294901760
    %v1660 = vsub.f32 %v658, %v1659
    %v1661 = vand.u32 %v1660, 4294901760
    %1662 = vmatmul.f32.gmra.mxu0 %v1661
    %v1663 = vpop.f32.mrf.mxu0
    %v1664 = vadd.f32 %v1585, %v1663
    %v1665 = vand.u32 %v662, 4294901760
    %v1666 = vsub.f32 %v662, %v1665
    %v1667 = vand.u32 %v1666, 4294901760
    %1668 = vmatmul.f32.gmra.mxu0 %v1667
    %v1669 = vpop.f32.mrf.mxu0
    %v1670 = vadd.f32 %v1590, %v1669
    %v1671 = vand.u32 %v666, 4294901760
    %v1672 = vsub.f32 %v666, %v1671
    %v1673 = vand.u32 %v1672, 4294901760
    %1674 = vmatmul.f32.gmra.mxu0 %v1673
    %v1675 = vpop.f32.mrf.mxu0
    %v1676 = vadd.f32 %v1595, %v1675
    %1677 = vdwg.mxu0
    %v1678 = vand.u32 %v714, 4294901760
    %v1679 = vsub.f32 %v714, %v1678
    %v1680 = vand.u32 %v1679, 4294901760
    %1681 = vmatpush.msra.mxu0 %v1680
    %v1682 = vand.u32 %v711, 4294901760
    %v1683 = vsub.f32 %v711, %v1682
    %v1684 = vand.u32 %v1683, 4294901760
    %1685 = vmatpush.msra.mxu0 %v1684
    %v1686 = vand.u32 %v708, 4294901760
    %v1687 = vsub.f32 %v708, %v1686
    %v1688 = vand.u32 %v1687, 4294901760
    %1689 = vmatpush.msra.mxu0 %v1688
    %v1690 = vand.u32 %v705, 4294901760
    %v1691 = vsub.f32 %v705, %v1690
    %v1692 = vand.u32 %v1691, 4294901760
    %1693 = vmatpush.msra.mxu0 %v1692
    %v1694 = vand.u32 %v702, 4294901760
    %v1695 = vsub.f32 %v702, %v1694
    %v1696 = vand.u32 %v1695, 4294901760
    %1697 = vmatpush.msra.mxu0 %v1696
    %v1698 = vand.u32 %v699, 4294901760
    %v1699 = vsub.f32 %v699, %v1698
    %v1700 = vand.u32 %v1699, 4294901760
    %1701 = vmatpush.msra.mxu0 %v1700
    %v1702 = vand.u32 %v696, 4294901760
    %v1703 = vsub.f32 %v696, %v1702
    %v1704 = vand.u32 %v1703, 4294901760
    %1705 = vmatpush.msra.mxu0 %v1704
    %v1706 = vand.u32 %v693, 4294901760
    %v1707 = vsub.f32 %v693, %v1706
    %v1708 = vand.u32 %v1707, 4294901760
    %1709 = vmatpush.msra.mxu0 %v1708
    %v1710 = vand.u32 %v690, 4294901760
    %v1711 = vsub.f32 %v690, %v1710
    %v1712 = vand.u32 %v1711, 4294901760
    %1713 = vmatpush.msra.mxu0 %v1712
    %v1714 = vand.u32 %v687, 4294901760
    %v1715 = vsub.f32 %v687, %v1714
    %v1716 = vand.u32 %v1715, 4294901760
    %1717 = vmatpush.msra.mxu0 %v1716
    %v1718 = vand.u32 %v684, 4294901760
    %v1719 = vsub.f32 %v684, %v1718
    %v1720 = vand.u32 %v1719, 4294901760
    %1721 = vmatpush.msra.mxu0 %v1720
    %v1722 = vand.u32 %v681, 4294901760
    %v1723 = vsub.f32 %v681, %v1722
    %v1724 = vand.u32 %v1723, 4294901760
    %1725 = vmatpush.msra.mxu0 %v1724
    %v1726 = vand.u32 %v678, 4294901760
    %v1727 = vsub.f32 %v678, %v1726
    %v1728 = vand.u32 %v1727, 4294901760
    %1729 = vmatpush.msra.mxu0 %v1728
    %v1730 = vand.u32 %v675, 4294901760
    %v1731 = vsub.f32 %v675, %v1730
    %v1732 = vand.u32 %v1731, 4294901760
    %1733 = vmatpush.msra.mxu0 %v1732
    %v1734 = vand.u32 %v672, 4294901760
    %v1735 = vsub.f32 %v672, %v1734
    %v1736 = vand.u32 %v1735, 4294901760
    %1737 = vmatpush.msra.mxu0 %v1736
    %v1738 = vand.u32 %v669, 4294901760
    %v1739 = vsub.f32 %v669, %v1738
    %v1740 = vand.u32 %v1739, 4294901760
    %1741 = vmatpush.msra.mxu0 %v1740
    %v1742 = vand.u32 %v638, 4294901760
    %1743 = vmatmul.f32.gmra.mxu0 %v1742
    %v1744 = vpop.f32.mrf.mxu0
    %v1745 = vadd.f32 %v1634, %v1744
    %v1746 = vand.u32 %v642, 4294901760
    %1747 = vmatmul.f32.gmra.mxu0 %v1746
    %v1748 = vpop.f32.mrf.mxu0
    %v1749 = vadd.f32 %v1640, %v1748
    %v1750 = vand.u32 %v646, 4294901760
    %1751 = vmatmul.f32.gmra.mxu0 %v1750
    %v1752 = vpop.f32.mrf.mxu0
    %v1753 = vadd.f32 %v1646, %v1752
    %v1754 = vand.u32 %v650, 4294901760
    %1755 = vmatmul.f32.gmra.mxu0 %v1754
    %v1756 = vpop.f32.mrf.mxu0
    %v1757 = vadd.f32 %v1652, %v1756
    %v1758 = vand.u32 %v654, 4294901760
    %1759 = vmatmul.f32.gmra.mxu0 %v1758
    %v1760 = vpop.f32.mrf.mxu0
    %v1761 = vadd.f32 %v1658, %v1760
    %v1762 = vand.u32 %v658, 4294901760
    %1763 = vmatmul.f32.gmra.mxu0 %v1762
    %v1764 = vpop.f32.mrf.mxu0
    %v1765 = vadd.f32 %v1664, %v1764
    %v1766 = vand.u32 %v662, 4294901760
    %1767 = vmatmul.f32.gmra.mxu0 %v1766
    %v1768 = vpop.f32.mrf.mxu0
    %v1769 = vadd.f32 %v1670, %v1768
    %v1770 = vand.u32 %v666, 4294901760
    %1771 = vmatmul.f32.gmra.mxu0 %v1770
    %v1772 = vpop.f32.mrf.mxu0
    %v1773 = vadd.f32 %v1676, %v1772
    %1774 = vdwg.mxu0
    %v1775 = vand.u32 %v714, 4294901760
    %1776 = vmatpush.msra.mxu0 %v1775
    %v1777 = vand.u32 %v711, 4294901760
    %1778 = vmatpush.msra.mxu0 %v1777
    %v1779 = vand.u32 %v708, 4294901760
    %1780 = vmatpush.msra.mxu0 %v1779
    %v1781 = vand.u32 %v705, 4294901760
    %1782 = vmatpush.msra.mxu0 %v1781
    %v1783 = vand.u32 %v702, 4294901760
    %1784 = vmatpush.msra.mxu0 %v1783
    %v1785 = vand.u32 %v699, 4294901760
    %1786 = vmatpush.msra.mxu0 %v1785
    %v1787 = vand.u32 %v696, 4294901760
    %1788 = vmatpush.msra.mxu0 %v1787
    %v1789 = vand.u32 %v693, 4294901760
    %1790 = vmatpush.msra.mxu0 %v1789
    %v1791 = vand.u32 %v690, 4294901760
    %1792 = vmatpush.msra.mxu0 %v1791
    %v1793 = vand.u32 %v687, 4294901760
    %1794 = vmatpush.msra.mxu0 %v1793
    %v1795 = vand.u32 %v684, 4294901760
    %1796 = vmatpush.msra.mxu0 %v1795
    %v1797 = vand.u32 %v681, 4294901760
    %1798 = vmatpush.msra.mxu0 %v1797
    %v1799 = vand.u32 %v678, 4294901760
    %1800 = vmatpush.msra.mxu0 %v1799
    %v1801 = vand.u32 %v675, 4294901760
    %1802 = vmatpush.msra.mxu0 %v1801
    %v1803 = vand.u32 %v672, 4294901760
    %1804 = vmatpush.msra.mxu0 %v1803
    %v1805 = vand.u32 %v669, 4294901760
    %1806 = vmatpush.msra.mxu0 %v1805
    %v1807 = vand.u32 %v638, 4294901760
    %1808 = vmatmul.f32.gmra.mxu0 %v1807
    %v1809 = vpop.f32.mrf.mxu0
    %v1810 = vadd.f32 %v1745, %v1809
    %v1811 = vand.u32 %v642, 4294901760
    %1812 = vmatmul.f32.gmra.mxu0 %v1811
    %v1813 = vpop.f32.mrf.mxu0
    %v1814 = vadd.f32 %v1749, %v1813
    %v1815 = vand.u32 %v646, 4294901760
    %1816 = vmatmul.f32.gmra.mxu0 %v1815
    %v1817 = vpop.f32.mrf.mxu0
    %v1818 = vadd.f32 %v1753, %v1817
    %v1819 = vand.u32 %v650, 4294901760
    %1820 = vmatmul.f32.gmra.mxu0 %v1819
    %v1821 = vpop.f32.mrf.mxu0
    %v1822 = vadd.f32 %v1757, %v1821
    %v1823 = vand.u32 %v654, 4294901760
    %1824 = vmatmul.f32.gmra.mxu0 %v1823
    %v1825 = vpop.f32.mrf.mxu0
    %v1826 = vadd.f32 %v1761, %v1825
    %v1827 = vand.u32 %v658, 4294901760
    %1828 = vmatmul.f32.gmra.mxu0 %v1827
    %v1829 = vpop.f32.mrf.mxu0
    %v1830 = vadd.f32 %v1765, %v1829
    %v1831 = vand.u32 %v662, 4294901760
    %1832 = vmatmul.f32.gmra.mxu0 %v1831
    %v1833 = vpop.f32.mrf.mxu0
    %v1834 = vadd.f32 %v1769, %v1833
    %v1835 = vand.u32 %v666, 4294901760
    %1836 = vmatmul.f32.gmra.mxu0 %v1835
    %v1837 = vpop.f32.mrf.mxu0
    %v1838 = vadd.f32 %v1773, %v1837
    %1839 = vdwg.mxu0
    %v1840 = vand.u32 %v715, 4294901760
    %1841 = vmatpush.msra.mxu0 %v1840
    %v1842 = vand.u32 %v712, 4294901760
    %1843 = vmatpush.msra.mxu0 %v1842
    %v1844 = vand.u32 %v709, 4294901760
    %1845 = vmatpush.msra.mxu0 %v1844
    %v1846 = vand.u32 %v706, 4294901760
    %1847 = vmatpush.msra.mxu0 %v1846
    %v1848 = vand.u32 %v703, 4294901760
    %1849 = vmatpush.msra.mxu0 %v1848
    %v1850 = vand.u32 %v700, 4294901760
    %1851 = vmatpush.msra.mxu0 %v1850
    %v1852 = vand.u32 %v697, 4294901760
    %1853 = vmatpush.msra.mxu0 %v1852
    %v1854 = vand.u32 %v694, 4294901760
    %1855 = vmatpush.msra.mxu0 %v1854
    %v1856 = vand.u32 %v691, 4294901760
    %1857 = vmatpush.msra.mxu0 %v1856
    %v1858 = vand.u32 %v688, 4294901760
    %1859 = vmatpush.msra.mxu0 %v1858
    %v1860 = vand.u32 %v685, 4294901760
    %1861 = vmatpush.msra.mxu0 %v1860
    %v1862 = vand.u32 %v682, 4294901760
    %1863 = vmatpush.msra.mxu0 %v1862
    %v1864 = vand.u32 %v679, 4294901760
    %1865 = vmatpush.msra.mxu0 %v1864
    %v1866 = vand.u32 %v676, 4294901760
    %1867 = vmatpush.msra.mxu0 %v1866
    %v1868 = vand.u32 %v673, 4294901760
    %1869 = vmatpush.msra.mxu0 %v1868
    %v1870 = vand.u32 %v670, 4294901760
    %1871 = vmatpush.msra.mxu0 %v1870
    %v1872 = vand.u32 %v638, 4294901760
    %v1873 = vsub.f32 %v638, %v1872
    %v1874 = vand.u32 %v1873, 4294901760
    %v1875 = vsub.f32 %v1873, %v1874
    %v1876 = vand.u32 %v1875, 4294901760
    %1877 = vmatmul.f32.gmra.mxu0 %v1876
    %v1878 = vpop.f32.mrf.mxu0
    %v1879 = vadd.f32 %v720, %v1878
    %v1880 = vand.u32 %v642, 4294901760
    %v1881 = vsub.f32 %v642, %v1880
    %v1882 = vand.u32 %v1881, 4294901760
    %v1883 = vsub.f32 %v1881, %v1882
    %v1884 = vand.u32 %v1883, 4294901760
    %1885 = vmatmul.f32.gmra.mxu0 %v1884
    %v1886 = vpop.f32.mrf.mxu0
    %v1887 = vadd.f32 %v720, %v1886
    %v1888 = vand.u32 %v646, 4294901760
    %v1889 = vsub.f32 %v646, %v1888
    %v1890 = vand.u32 %v1889, 4294901760
    %v1891 = vsub.f32 %v1889, %v1890
    %v1892 = vand.u32 %v1891, 4294901760
    %1893 = vmatmul.f32.gmra.mxu0 %v1892
    %v1894 = vpop.f32.mrf.mxu0
    %v1895 = vadd.f32 %v720, %v1894
    %v1896 = vand.u32 %v650, 4294901760
    %v1897 = vsub.f32 %v650, %v1896
    %v1898 = vand.u32 %v1897, 4294901760
    %v1899 = vsub.f32 %v1897, %v1898
    %v1900 = vand.u32 %v1899, 4294901760
    %1901 = vmatmul.f32.gmra.mxu0 %v1900
    %v1902 = vpop.f32.mrf.mxu0
    %v1903 = vadd.f32 %v720, %v1902
    %v1904 = vand.u32 %v654, 4294901760
    %v1905 = vsub.f32 %v654, %v1904
    %v1906 = vand.u32 %v1905, 4294901760
    %v1907 = vsub.f32 %v1905, %v1906
    %v1908 = vand.u32 %v1907, 4294901760
    %1909 = vmatmul.f32.gmra.mxu0 %v1908
    %v1910 = vpop.f32.mrf.mxu0
    %v1911 = vadd.f32 %v720, %v1910
    %v1912 = vand.u32 %v658, 4294901760
    %v1913 = vsub.f32 %v658, %v1912
    %v1914 = vand.u32 %v1913, 4294901760
    %v1915 = vsub.f32 %v1913, %v1914
    %v1916 = vand.u32 %v1915, 4294901760
    %1917 = vmatmul.f32.gmra.mxu0 %v1916
    %v1918 = vpop.f32.mrf.mxu0
    %v1919 = vadd.f32 %v720, %v1918
    %v1920 = vand.u32 %v662, 4294901760
    %v1921 = vsub.f32 %v662, %v1920
    %v1922 = vand.u32 %v1921, 4294901760
    %v1923 = vsub.f32 %v1921, %v1922
    %v1924 = vand.u32 %v1923, 4294901760
    %1925 = vmatmul.f32.gmra.mxu0 %v1924
    %v1926 = vpop.f32.mrf.mxu0
    %v1927 = vadd.f32 %v720, %v1926
    %v1928 = vand.u32 %v666, 4294901760
    %v1929 = vsub.f32 %v666, %v1928
    %v1930 = vand.u32 %v1929, 4294901760
    %v1931 = vsub.f32 %v1929, %v1930
    %v1932 = vand.u32 %v1931, 4294901760
    %1933 = vmatmul.f32.gmra.mxu0 %v1932
    %v1934 = vpop.f32.mrf.mxu0
    %v1935 = vadd.f32 %v720, %v1934
    %1936 = vdwg.mxu0
    %v1937 = vand.u32 %v715, 4294901760
    %v1938 = vsub.f32 %v715, %v1937
    %v1939 = vand.u32 %v1938, 4294901760
    %v1940 = vsub.f32 %v1938, %v1939
    %v1941 = vand.u32 %v1940, 4294901760
    %1942 = vmatpush.msra.mxu0 %v1941
    %v1943 = vand.u32 %v712, 4294901760
    %v1944 = vsub.f32 %v712, %v1943
    %v1945 = vand.u32 %v1944, 4294901760
    %v1946 = vsub.f32 %v1944, %v1945
    %v1947 = vand.u32 %v1946, 4294901760
    %1948 = vmatpush.msra.mxu0 %v1947
    %v1949 = vand.u32 %v709, 4294901760
    %v1950 = vsub.f32 %v709, %v1949
    %v1951 = vand.u32 %v1950, 4294901760
    %v1952 = vsub.f32 %v1950, %v1951
    %v1953 = vand.u32 %v1952, 4294901760
    %1954 = vmatpush.msra.mxu0 %v1953
    %v1955 = vand.u32 %v706, 4294901760
    %v1956 = vsub.f32 %v706, %v1955
    %v1957 = vand.u32 %v1956, 4294901760
    %v1958 = vsub.f32 %v1956, %v1957
    %v1959 = vand.u32 %v1958, 4294901760
    %1960 = vmatpush.msra.mxu0 %v1959
    %v1961 = vand.u32 %v703, 4294901760
    %v1962 = vsub.f32 %v703, %v1961
    %v1963 = vand.u32 %v1962, 4294901760
    %v1964 = vsub.f32 %v1962, %v1963
    %v1965 = vand.u32 %v1964, 4294901760
    %1966 = vmatpush.msra.mxu0 %v1965
    %v1967 = vand.u32 %v700, 4294901760
    %v1968 = vsub.f32 %v700, %v1967
    %v1969 = vand.u32 %v1968, 4294901760
    %v1970 = vsub.f32 %v1968, %v1969
    %v1971 = vand.u32 %v1970, 4294901760
    %1972 = vmatpush.msra.mxu0 %v1971
    %v1973 = vand.u32 %v697, 4294901760
    %v1974 = vsub.f32 %v697, %v1973
    %v1975 = vand.u32 %v1974, 4294901760
    %v1976 = vsub.f32 %v1974, %v1975
    %v1977 = vand.u32 %v1976, 4294901760
    %1978 = vmatpush.msra.mxu0 %v1977
    %v1979 = vand.u32 %v694, 4294901760
    %v1980 = vsub.f32 %v694, %v1979
    %v1981 = vand.u32 %v1980, 4294901760
    %v1982 = vsub.f32 %v1980, %v1981
    %v1983 = vand.u32 %v1982, 4294901760
    %1984 = vmatpush.msra.mxu0 %v1983
    %v1985 = vand.u32 %v691, 4294901760
    %v1986 = vsub.f32 %v691, %v1985
    %v1987 = vand.u32 %v1986, 4294901760
    %v1988 = vsub.f32 %v1986, %v1987
    %v1989 = vand.u32 %v1988, 4294901760
    %1990 = vmatpush.msra.mxu0 %v1989
    %v1991 = vand.u32 %v688, 4294901760
    %v1992 = vsub.f32 %v688, %v1991
    %v1993 = vand.u32 %v1992, 4294901760
    %v1994 = vsub.f32 %v1992, %v1993
    %v1995 = vand.u32 %v1994, 4294901760
    %1996 = vmatpush.msra.mxu0 %v1995
    %v1997 = vand.u32 %v685, 4294901760
    %v1998 = vsub.f32 %v685, %v1997
    %v1999 = vand.u32 %v1998, 4294901760
    %v2000 = vsub.f32 %v1998, %v1999
    %v2001 = vand.u32 %v2000, 4294901760
    %2002 = vmatpush.msra.mxu0 %v2001
    %v2003 = vand.u32 %v682, 4294901760
    %v2004 = vsub.f32 %v682, %v2003
    %v2005 = vand.u32 %v2004, 4294901760
    %v2006 = vsub.f32 %v2004, %v2005
    %v2007 = vand.u32 %v2006, 4294901760
    %2008 = vmatpush.msra.mxu0 %v2007
    %v2009 = vand.u32 %v679, 4294901760
    %v2010 = vsub.f32 %v679, %v2009
    %v2011 = vand.u32 %v2010, 4294901760
    %v2012 = vsub.f32 %v2010, %v2011
    %v2013 = vand.u32 %v2012, 4294901760
    %2014 = vmatpush.msra.mxu0 %v2013
    %v2015 = vand.u32 %v676, 4294901760
    %v2016 = vsub.f32 %v676, %v2015
    %v2017 = vand.u32 %v2016, 4294901760
    %v2018 = vsub.f32 %v2016, %v2017
    %v2019 = vand.u32 %v2018, 4294901760
    %2020 = vmatpush.msra.mxu0 %v2019
    %v2021 = vand.u32 %v673, 4294901760
    %v2022 = vsub.f32 %v673, %v2021
    %v2023 = vand.u32 %v2022, 4294901760
    %v2024 = vsub.f32 %v2022, %v2023
    %v2025 = vand.u32 %v2024, 4294901760
    %2026 = vmatpush.msra.mxu0 %v2025
    %v2027 = vand.u32 %v670, 4294901760
    %v2028 = vsub.f32 %v670, %v2027
    %v2029 = vand.u32 %v2028, 4294901760
    %v2030 = vsub.f32 %v2028, %v2029
    %v2031 = vand.u32 %v2030, 4294901760
    %2032 = vmatpush.msra.mxu0 %v2031
    %v2033 = vand.u32 %v638, 4294901760
    %2034 = vmatmul.f32.gmra.mxu0 %v2033
    %v2035 = vpop.f32.mrf.mxu0
    %v2036 = vadd.f32 %v1879, %v2035
    %v2037 = vand.u32 %v642, 4294901760
    %2038 = vmatmul.f32.gmra.mxu0 %v2037
    %v2039 = vpop.f32.mrf.mxu0
    %v2040 = vadd.f32 %v1887, %v2039
    %v2041 = vand.u32 %v646, 4294901760
    %2042 = vmatmul.f32.gmra.mxu0 %v2041
    %v2043 = vpop.f32.mrf.mxu0
    %v2044 = vadd.f32 %v1895, %v2043
    %v2045 = vand.u32 %v650, 4294901760
    %2046 = vmatmul.f32.gmra.mxu0 %v2045
    %v2047 = vpop.f32.mrf.mxu0
    %v2048 = vadd.f32 %v1903, %v2047
    %v2049 = vand.u32 %v654, 4294901760
    %2050 = vmatmul.f32.gmra.mxu0 %v2049
    %v2051 = vpop.f32.mrf.mxu0
    %v2052 = vadd.f32 %v1911, %v2051
    %v2053 = vand.u32 %v658, 4294901760
    %2054 = vmatmul.f32.gmra.mxu0 %v2053
    %v2055 = vpop.f32.mrf.mxu0
    %v2056 = vadd.f32 %v1919, %v2055
    %v2057 = vand.u32 %v662, 4294901760
    %2058 = vmatmul.f32.gmra.mxu0 %v2057
    %v2059 = vpop.f32.mrf.mxu0
    %v2060 = vadd.f32 %v1927, %v2059
    %v2061 = vand.u32 %v666, 4294901760
    %2062 = vmatmul.f32.gmra.mxu0 %v2061
    %v2063 = vpop.f32.mrf.mxu0
    %v2064 = vadd.f32 %v1935, %v2063
    %2065 = vdwg.mxu0
    %v2066 = vand.u32 %v715, 4294901760
    %v2067 = vsub.f32 %v715, %v2066
    %2068 = vmatpush.msra.mxu0 %v2067
    %v2069 = vand.u32 %v712, 4294901760
    %v2070 = vsub.f32 %v712, %v2069
    %2071 = vmatpush.msra.mxu0 %v2070
    %v2072 = vand.u32 %v709, 4294901760
    %v2073 = vsub.f32 %v709, %v2072
    %2074 = vmatpush.msra.mxu0 %v2073
    %v2075 = vand.u32 %v706, 4294901760
    %v2076 = vsub.f32 %v706, %v2075
    %2077 = vmatpush.msra.mxu0 %v2076
    %v2078 = vand.u32 %v703, 4294901760
    %v2079 = vsub.f32 %v703, %v2078
    %2080 = vmatpush.msra.mxu0 %v2079
    %v2081 = vand.u32 %v700, 4294901760
    %v2082 = vsub.f32 %v700, %v2081
    %2083 = vmatpush.msra.mxu0 %v2082
    %v2084 = vand.u32 %v697, 4294901760
    %v2085 = vsub.f32 %v697, %v2084
    %2086 = vmatpush.msra.mxu0 %v2085
    %v2087 = vand.u32 %v694, 4294901760
    %v2088 = vsub.f32 %v694, %v2087
    %2089 = vmatpush.msra.mxu0 %v2088
    %v2090 = vand.u32 %v691, 4294901760
    %v2091 = vsub.f32 %v691, %v2090
    %2092 = vmatpush.msra.mxu0 %v2091
    %v2093 = vand.u32 %v688, 4294901760
    %v2094 = vsub.f32 %v688, %v2093
    %2095 = vmatpush.msra.mxu0 %v2094
    %v2096 = vand.u32 %v685, 4294901760
    %v2097 = vsub.f32 %v685, %v2096
    %2098 = vmatpush.msra.mxu0 %v2097
    %v2099 = vand.u32 %v682, 4294901760
    %v2100 = vsub.f32 %v682, %v2099
    %2101 = vmatpush.msra.mxu0 %v2100
    %v2102 = vand.u32 %v679, 4294901760
    %v2103 = vsub.f32 %v679, %v2102
    %2104 = vmatpush.msra.mxu0 %v2103
    %v2105 = vand.u32 %v676, 4294901760
    %v2106 = vsub.f32 %v676, %v2105
    %2107 = vmatpush.msra.mxu0 %v2106
    %v2108 = vand.u32 %v673, 4294901760
    %v2109 = vsub.f32 %v673, %v2108
    %2110 = vmatpush.msra.mxu0 %v2109
    %v2111 = vand.u32 %v670, 4294901760
    %v2112 = vsub.f32 %v670, %v2111
    %2113 = vmatpush.msra.mxu0 %v2112
    %v2114 = vand.u32 %v638, 4294901760
    %v2115 = vsub.f32 %v638, %v2114
    %2116 = vmatmul.f32.gmra.mxu0 %v2115
    %v2117 = vpop.f32.mrf.mxu0
    %v2118 = vadd.f32 %v2036, %v2117
    %v2119 = vand.u32 %v642, 4294901760
    %v2120 = vsub.f32 %v642, %v2119
    %2121 = vmatmul.f32.gmra.mxu0 %v2120
    %v2122 = vpop.f32.mrf.mxu0
    %v2123 = vadd.f32 %v2040, %v2122
    %v2124 = vand.u32 %v646, 4294901760
    %v2125 = vsub.f32 %v646, %v2124
    %2126 = vmatmul.f32.gmra.mxu0 %v2125
    %v2127 = vpop.f32.mrf.mxu0
    %v2128 = vadd.f32 %v2044, %v2127
    %v2129 = vand.u32 %v650, 4294901760
    %v2130 = vsub.f32 %v650, %v2129
    %2131 = vmatmul.f32.gmra.mxu0 %v2130
    %v2132 = vpop.f32.mrf.mxu0
    %v2133 = vadd.f32 %v2048, %v2132
    %v2134 = vand.u32 %v654, 4294901760
    %v2135 = vsub.f32 %v654, %v2134
    %2136 = vmatmul.f32.gmra.mxu0 %v2135
    %v2137 = vpop.f32.mrf.mxu0
    %v2138 = vadd.f32 %v2052, %v2137
    %v2139 = vand.u32 %v658, 4294901760
    %v2140 = vsub.f32 %v658, %v2139
    %2141 = vmatmul.f32.gmra.mxu0 %v2140
    %v2142 = vpop.f32.mrf.mxu0
    %v2143 = vadd.f32 %v2056, %v2142
    %v2144 = vand.u32 %v662, 4294901760
    %v2145 = vsub.f32 %v662, %v2144
    %2146 = vmatmul.f32.gmra.mxu0 %v2145
    %v2147 = vpop.f32.mrf.mxu0
    %v2148 = vadd.f32 %v2060, %v2147
    %v2149 = vand.u32 %v666, 4294901760
    %v2150 = vsub.f32 %v666, %v2149
    %2151 = vmatmul.f32.gmra.mxu0 %v2150
    %v2152 = vpop.f32.mrf.mxu0
    %v2153 = vadd.f32 %v2064, %v2152
    %2154 = vdwg.mxu0
    %v2155 = vand.u32 %v715, 4294901760
    %2156 = vmatpush.msra.mxu0 %v2155
    %v2157 = vand.u32 %v712, 4294901760
    %2158 = vmatpush.msra.mxu0 %v2157
    %v2159 = vand.u32 %v709, 4294901760
    %2160 = vmatpush.msra.mxu0 %v2159
    %v2161 = vand.u32 %v706, 4294901760
    %2162 = vmatpush.msra.mxu0 %v2161
    %v2163 = vand.u32 %v703, 4294901760
    %2164 = vmatpush.msra.mxu0 %v2163
    %v2165 = vand.u32 %v700, 4294901760
    %2166 = vmatpush.msra.mxu0 %v2165
    %v2167 = vand.u32 %v697, 4294901760
    %2168 = vmatpush.msra.mxu0 %v2167
    %v2169 = vand.u32 %v694, 4294901760
    %2170 = vmatpush.msra.mxu0 %v2169
    %v2171 = vand.u32 %v691, 4294901760
    %2172 = vmatpush.msra.mxu0 %v2171
    %v2173 = vand.u32 %v688, 4294901760
    %2174 = vmatpush.msra.mxu0 %v2173
    %v2175 = vand.u32 %v685, 4294901760
    %2176 = vmatpush.msra.mxu0 %v2175
    %v2177 = vand.u32 %v682, 4294901760
    %2178 = vmatpush.msra.mxu0 %v2177
    %v2179 = vand.u32 %v679, 4294901760
    %2180 = vmatpush.msra.mxu0 %v2179
    %v2181 = vand.u32 %v676, 4294901760
    %2182 = vmatpush.msra.mxu0 %v2181
    %v2183 = vand.u32 %v673, 4294901760
    %2184 = vmatpush.msra.mxu0 %v2183
    %v2185 = vand.u32 %v670, 4294901760
    %2186 = vmatpush.msra.mxu0 %v2185
    %v2187 = vand.u32 %v638, 4294901760
    %v2188 = vsub.f32 %v638, %v2187
    %v2189 = vand.u32 %v2188, 4294901760
    %2190 = vmatmul.f32.gmra.mxu0 %v2189
    %v2191 = vpop.f32.mrf.mxu0
    %v2192 = vadd.f32 %v2118, %v2191
    %v2193 = vand.u32 %v642, 4294901760
    %v2194 = vsub.f32 %v642, %v2193
    %v2195 = vand.u32 %v2194, 4294901760
    %2196 = vmatmul.f32.gmra.mxu0 %v2195
    %v2197 = vpop.f32.mrf.mxu0
    %v2198 = vadd.f32 %v2123, %v2197
    %v2199 = vand.u32 %v646, 4294901760
    %v2200 = vsub.f32 %v646, %v2199
    %v2201 = vand.u32 %v2200, 4294901760
    %2202 = vmatmul.f32.gmra.mxu0 %v2201
    %v2203 = vpop.f32.mrf.mxu0
    %v2204 = vadd.f32 %v2128, %v2203
    %v2205 = vand.u32 %v650, 4294901760
    %v2206 = vsub.f32 %v650, %v2205
    %v2207 = vand.u32 %v2206, 4294901760
    %2208 = vmatmul.f32.gmra.mxu0 %v2207
    %v2209 = vpop.f32.mrf.mxu0
    %v2210 = vadd.f32 %v2133, %v2209
    %v2211 = vand.u32 %v654, 4294901760
    %v2212 = vsub.f32 %v654, %v2211
    %v2213 = vand.u32 %v2212, 4294901760
    %2214 = vmatmul.f32.gmra.mxu0 %v2213
    %v2215 = vpop.f32.mrf.mxu0
    %v2216 = vadd.f32 %v2138, %v2215
    %v2217 = vand.u32 %v658, 4294901760
    %v2218 = vsub.f32 %v658, %v2217
    %v2219 = vand.u32 %v2218, 4294901760
    %2220 = vmatmul.f32.gmra.mxu0 %v2219
    %v2221 = vpop.f32.mrf.mxu0
    %v2222 = vadd.f32 %v2143, %v2221
    %v2223 = vand.u32 %v662, 4294901760
    %v2224 = vsub.f32 %v662, %v2223
    %v2225 = vand.u32 %v2224, 4294901760
    %2226 = vmatmul.f32.gmra.mxu0 %v2225
    %v2227 = vpop.f32.mrf.mxu0
    %v2228 = vadd.f32 %v2148, %v2227
    %v2229 = vand.u32 %v666, 4294901760
    %v2230 = vsub.f32 %v666, %v2229
    %v2231 = vand.u32 %v2230, 4294901760
    %2232 = vmatmul.f32.gmra.mxu0 %v2231
    %v2233 = vpop.f32.mrf.mxu0
    %v2234 = vadd.f32 %v2153, %v2233
    %2235 = vdwg.mxu0
    %v2236 = vand.u32 %v715, 4294901760
    %v2237 = vsub.f32 %v715, %v2236
    %v2238 = vand.u32 %v2237, 4294901760
    %2239 = vmatpush.msra.mxu0 %v2238
    %v2240 = vand.u32 %v712, 4294901760
    %v2241 = vsub.f32 %v712, %v2240
    %v2242 = vand.u32 %v2241, 4294901760
    %2243 = vmatpush.msra.mxu0 %v2242
    %v2244 = vand.u32 %v709, 4294901760
    %v2245 = vsub.f32 %v709, %v2244
    %v2246 = vand.u32 %v2245, 4294901760
    %2247 = vmatpush.msra.mxu0 %v2246
    %v2248 = vand.u32 %v706, 4294901760
    %v2249 = vsub.f32 %v706, %v2248
    %v2250 = vand.u32 %v2249, 4294901760
    %2251 = vmatpush.msra.mxu0 %v2250
    %v2252 = vand.u32 %v703, 4294901760
    %v2253 = vsub.f32 %v703, %v2252
    %v2254 = vand.u32 %v2253, 4294901760
    %2255 = vmatpush.msra.mxu0 %v2254
    %v2256 = vand.u32 %v700, 4294901760
    %v2257 = vsub.f32 %v700, %v2256
    %v2258 = vand.u32 %v2257, 4294901760
    %2259 = vmatpush.msra.mxu0 %v2258
    %v2260 = vand.u32 %v697, 4294901760
    %v2261 = vsub.f32 %v697, %v2260
    %v2262 = vand.u32 %v2261, 4294901760
    %2263 = vmatpush.msra.mxu0 %v2262
    %v2264 = vand.u32 %v694, 4294901760
    %v2265 = vsub.f32 %v694, %v2264
    %v2266 = vand.u32 %v2265, 4294901760
    %2267 = vmatpush.msra.mxu0 %v2266
    %v2268 = vand.u32 %v691, 4294901760
    %v2269 = vsub.f32 %v691, %v2268
    %v2270 = vand.u32 %v2269, 4294901760
    %2271 = vmatpush.msra.mxu0 %v2270
    %v2272 = vand.u32 %v688, 4294901760
    %v2273 = vsub.f32 %v688, %v2272
    %v2274 = vand.u32 %v2273, 4294901760
    %2275 = vmatpush.msra.mxu0 %v2274
    %v2276 = vand.u32 %v685, 4294901760
    %v2277 = vsub.f32 %v685, %v2276
    %v2278 = vand.u32 %v2277, 4294901760
    %2279 = vmatpush.msra.mxu0 %v2278
    %v2280 = vand.u32 %v682, 4294901760
    %v2281 = vsub.f32 %v682, %v2280
    %v2282 = vand.u32 %v2281, 4294901760
    %2283 = vmatpush.msra.mxu0 %v2282
    %v2284 = vand.u32 %v679, 4294901760
    %v2285 = vsub.f32 %v679, %v2284
    %v2286 = vand.u32 %v2285, 4294901760
    %2287 = vmatpush.msra.mxu0 %v2286
    %v2288 = vand.u32 %v676, 4294901760
    %v2289 = vsub.f32 %v676, %v2288
    %v2290 = vand.u32 %v2289, 4294901760
    %2291 = vmatpush.msra.mxu0 %v2290
    %v2292 = vand.u32 %v673, 4294901760
    %v2293 = vsub.f32 %v673, %v2292
    %v2294 = vand.u32 %v2293, 4294901760
    %2295 = vmatpush.msra.mxu0 %v2294
    %v2296 = vand.u32 %v670, 4294901760
    %v2297 = vsub.f32 %v670, %v2296
    %v2298 = vand.u32 %v2297, 4294901760
    %2299 = vmatpush.msra.mxu0 %v2298
    %v2300 = vand.u32 %v638, 4294901760
    %2301 = vmatmul.f32.gmra.mxu0 %v2300
    %v2302 = vpop.f32.mrf.mxu0
    %v2303 = vadd.f32 %v2192, %v2302
    %v2304 = vand.u32 %v642, 4294901760
    %2305 = vmatmul.f32.gmra.mxu0 %v2304
    %v2306 = vpop.f32.mrf.mxu0
    %v2307 = vadd.f32 %v2198, %v2306
    %v2308 = vand.u32 %v646, 4294901760
    %2309 = vmatmul.f32.gmra.mxu0 %v2308
    %v2310 = vpop.f32.mrf.mxu0
    %v2311 = vadd.f32 %v2204, %v2310
    %v2312 = vand.u32 %v650, 4294901760
    %2313 = vmatmul.f32.gmra.mxu0 %v2312
    %v2314 = vpop.f32.mrf.mxu0
    %v2315 = vadd.f32 %v2210, %v2314
    %v2316 = vand.u32 %v654, 4294901760
    %2317 = vmatmul.f32.gmra.mxu0 %v2316
    %v2318 = vpop.f32.mrf.mxu0
    %v2319 = vadd.f32 %v2216, %v2318
    %v2320 = vand.u32 %v658, 4294901760
    %2321 = vmatmul.f32.gmra.mxu0 %v2320
    %v2322 = vpop.f32.mrf.mxu0
    %v2323 = vadd.f32 %v2222, %v2322
    %v2324 = vand.u32 %v662, 4294901760
    %2325 = vmatmul.f32.gmra.mxu0 %v2324
    %v2326 = vpop.f32.mrf.mxu0
    %v2327 = vadd.f32 %v2228, %v2326
    %v2328 = vand.u32 %v666, 4294901760
    %2329 = vmatmul.f32.gmra.mxu0 %v2328
    %v2330 = vpop.f32.mrf.mxu0
    %v2331 = vadd.f32 %v2234, %v2330
    %2332 = vdwg.mxu0
    %v2333 = vand.u32 %v715, 4294901760
    %2334 = vmatpush.msra.mxu0 %v2333
    %v2335 = vand.u32 %v712, 4294901760
    %2336 = vmatpush.msra.mxu0 %v2335
    %v2337 = vand.u32 %v709, 4294901760
    %2338 = vmatpush.msra.mxu0 %v2337
    %v2339 = vand.u32 %v706, 4294901760
    %2340 = vmatpush.msra.mxu0 %v2339
    %v2341 = vand.u32 %v703, 4294901760
    %2342 = vmatpush.msra.mxu0 %v2341
    %v2343 = vand.u32 %v700, 4294901760
    %2344 = vmatpush.msra.mxu0 %v2343
    %v2345 = vand.u32 %v697, 4294901760
    %2346 = vmatpush.msra.mxu0 %v2345
    %v2347 = vand.u32 %v694, 4294901760
    %2348 = vmatpush.msra.mxu0 %v2347
    %v2349 = vand.u32 %v691, 4294901760
    %2350 = vmatpush.msra.mxu0 %v2349
    %v2351 = vand.u32 %v688, 4294901760
    %2352 = vmatpush.msra.mxu0 %v2351
    %v2353 = vand.u32 %v685, 4294901760
    %2354 = vmatpush.msra.mxu0 %v2353
    %v2355 = vand.u32 %v682, 4294901760
    %2356 = vmatpush.msra.mxu0 %v2355
    %v2357 = vand.u32 %v679, 4294901760
    %2358 = vmatpush.msra.mxu0 %v2357
    %v2359 = vand.u32 %v676, 4294901760
    %2360 = vmatpush.msra.mxu0 %v2359
    %v2361 = vand.u32 %v673, 4294901760
    %2362 = vmatpush.msra.mxu0 %v2361
    %v2363 = vand.u32 %v670, 4294901760
    %2364 = vmatpush.msra.mxu0 %v2363
    %v2365 = vand.u32 %v638, 4294901760
    %2366 = vmatmul.f32.gmra.mxu0 %v2365
    %v2367 = vpop.f32.mrf.mxu0
    %v2368 = vadd.f32 %v2303, %v2367
    %v2369 = vand.u32 %v642, 4294901760
    %2370 = vmatmul.f32.gmra.mxu0 %v2369
    %v2371 = vpop.f32.mrf.mxu0
    %v2372 = vadd.f32 %v2307, %v2371
    %v2373 = vand.u32 %v646, 4294901760
    %2374 = vmatmul.f32.gmra.mxu0 %v2373
    %v2375 = vpop.f32.mrf.mxu0
    %v2376 = vadd.f32 %v2311, %v2375
    %v2377 = vand.u32 %v650, 4294901760
    %2378 = vmatmul.f32.gmra.mxu0 %v2377
    %v2379 = vpop.f32.mrf.mxu0
    %v2380 = vadd.f32 %v2315, %v2379
    %v2381 = vand.u32 %v654, 4294901760
    %2382 = vmatmul.f32.gmra.mxu0 %v2381
    %v2383 = vpop.f32.mrf.mxu0
    %v2384 = vadd.f32 %v2319, %v2383
    %v2385 = vand.u32 %v658, 4294901760
    %2386 = vmatmul.f32.gmra.mxu0 %v2385
    %v2387 = vpop.f32.mrf.mxu0
    %v2388 = vadd.f32 %v2323, %v2387
    %v2389 = vand.u32 %v662, 4294901760
    %2390 = vmatmul.f32.gmra.mxu0 %v2389
    %v2391 = vpop.f32.mrf.mxu0
    %v2392 = vadd.f32 %v2327, %v2391
    %v2393 = vand.u32 %v666, 4294901760
    %2394 = vmatmul.f32.gmra.mxu0 %v2393
    %v2395 = vpop.f32.mrf.mxu0
    %v2396 = vadd.f32 %v2331, %v2395
    %2397 = vdwg.mxu0
    %2398 = vst [vmem:[#allocation10] sm:$0xff] %v1252
    %2399 = vst [vmem:[#allocation10 + $0x8] sm:$0xff] %v1810
    %2400 = vst [vmem:[#allocation10 + $0x10] sm:$0xff] %v2368
    %2401 = vst [vmem:[#allocation10 + $0x18] sm:$0xff] %v1256
    %2402 = vst [vmem:[#allocation10 + $0x20] sm:$0xff] %v1814
    %2403 = vst [vmem:[#allocation10 + $0x28] sm:$0xff] %v2372
    %2404 = vst [vmem:[#allocation10 + $0x30] sm:$0xff] %v1260
    %2405 = vst [vmem:[#allocation10 + $0x38] sm:$0xff] %v1818
    %2406 = vst [vmem:[#allocation10 + $0x40] sm:$0xff] %v2376
    %2407 = vst [vmem:[#allocation10 + $0x48] sm:$0xff] %v1264
    %2408 = vst [vmem:[#allocation10 + $0x50] sm:$0xff] %v1822
    %2409 = vst [vmem:[#allocation10 + $0x58] sm:$0xff] %v2380
    %2410 = vst [vmem:[#allocation10 + $0x60] sm:$0xff] %v1268
    %2411 = vst [vmem:[#allocation10 + $0x68] sm:$0xff] %v1826
    %2412 = vst [vmem:[#allocation10 + $0x70] sm:$0xff] %v2384
    %2413 = vst [vmem:[#allocation10 + $0x78] sm:$0xff] %v1272
    %2414 = vst [vmem:[#allocation10 + $0x80] sm:$0xff] %v1830
    %2415 = vst [vmem:[#allocation10 + $0x88] sm:$0xff] %v2388
    %2416 = vst [vmem:[#allocation10 + $0x90] sm:$0xff] %v1276
    %2417 = vst [vmem:[#allocation10 + $0x98] sm:$0xff] %v1834
    %2418 = vst [vmem:[#allocation10 + $0xa0] sm:$0xff] %v2392
    %2419 = vst [vmem:[#allocation10 + $0xa8] sm:$0xff] %v1280
    %2420 = vst [vmem:[#allocation10 + $0xb0] sm:$0xff] %v1838
    %2421 = vst [vmem:[#allocation10 + $0xb8] sm:$0xff] %v2396
    // Predicated region
    $region38: #{tpu_custom_call.1} parent=1 // pred_check
      _
    $region39: #{tpu_custom_call.1} parent=1 // pred_check_branch
      %2423 = sbr.rel (0) target = $region41
    $region40: #{tpu_custom_call.1} parent=1 // pred_region
      %2425 = vsyncadd [#allocation4], 0
      %s2426 = sshll.u32 [#allocation10], 4
      %s2427 = int_to_ptr.vmem [resolvable:$true] %s2426
      %s2428 = sshll.u32 %s5, 4
      %s2429 = int_to_ptr.hbm [resolvable:$true] %s2428
      %2434 = dma.vmem_to_hbm [thread:$0]  %s2427, 3072, %s2429, [#allocation4], 384, 384, 24
    $region41: #{tpu_custom_call.1} parent=1 // pred_fallthru
      _
    // Predicated region
    $region42: #{tpu_custom_call.1} parent=1 // pred_check
      _
    $region43: #{tpu_custom_call.1} parent=1 // pred_check_branch
      %2436 = sbr.rel (0) target = $region45
    $region44: #{tpu_custom_call.1} parent=1 // pred_region
      %2438 = dma.done [#allocation4], 3072
    $region45: #{tpu_custom_call.1} parent=1 // pred_fallthru
      _
    %2439 = vsyncpa [#allocation3], 1
    %2440 = vsyncpa [#allocation6], 1
    %2441 = vsyncpa [#allocation9], 1
    %2442 = vsyncpa [#allocation4], 1

</llo_original>
